<compile_context>
chip_gen: v6e
topology: v6e:2x2x1
jax: 0.10.0
libtpu: 0.0.40
codegen_flags: <defaults>
</compile_context>

<pallas_src>
import jax
import jax.numpy as jnp
from jax.experimental import pallas as pl
from jax.experimental.pallas import tpu as pltpu


# ----------------------------------------------------------------------------
# Kernel 1: fused conv stack + hoisted LSTM input projection
# ----------------------------------------------------------------------------
def make_conv_gates_kernel(n_convs, K, pad, T, C, bb):
    """Fused [Conv1d+BN+ReLU] x n_convs, then gates = y @ Wih_comb + b_comb.

    x_ref:     (bb, T, C)        channels-last batch tile
    w_ref:     (L, K, C, C)      conv taps, [layer, k, c_in, c_out]
    scale_ref: (L, 1, C)         gamma / sqrt(running_var + eps)
    shift_ref: (L, 1, C)         (conv_bias - running_mean) * scale + beta
    wih_ref:   (C, 8H)           [fwd i|f|g|o , bwd i|f|g|o] input weights
    bih_ref:   (1, 8H)           (b_ih + b_hh) for both directions
    gates_ref: (bb, T, 8H)       precomputed LSTM input gates (output)
    xpad:      (bb, T+2*pad, C)  VMEM scratch, activation stays resident here
    """
    def kernel(x_ref, w_ref, scale_ref, shift_ref, wih_ref, bih_ref,
               gates_ref, xpad):
        G = gates_ref.shape[-1]
        # zero padding halo + place the input slab (stays in VMEM for all layers)
        xpad[...] = jnp.zeros_like(xpad)
        xpad[:, pad:pad + T, :] = x_ref[...]
        for l in range(n_convs):                      # static unroll over layers
            xp = xpad[...]                            # (bb, T+2p, C)
            acc = jnp.zeros((bb * T, C), jnp.float32)
            for k in range(K):                        # K MXU matmuls per layer
                xs = xp[:, k:k + T, :].reshape(bb * T, C)
                acc = acc + jnp.dot(xs, w_ref[l, k],
                                    preferred_element_type=jnp.float32)
            # fused BatchNorm(eval) + ReLU.  F.dropout(0.5, training=False) == id.
            y = jnp.maximum(acc * scale_ref[l] + shift_ref[l], 0.0)  # (bb*T, C)
            if l + 1 < n_convs:
                xpad[:, pad:pad + T, :] = y.reshape(bb, T, C)
            else:
                # epilogue: hoisted LSTM input projection for both directions
                g = jnp.dot(y, wih_ref[...],
                            preferred_element_type=jnp.float32) + bih_ref[...]
                gates_ref[...] = g.reshape(bb, T, G)
    return kernel


def conv_gates(x_btc, params):
    B, T, C = x_btc.shape
    w = params["w"]
    L, K = int(w.shape[0]), int(w.shape[1])
    pad = params["pad"]
    G = int(params["wih"].shape[1])
    bb = B                    # batch tile (whole batch at demo size)
    grid = (B // bb,)
    kernel = make_conv_gates_kernel(L, K, pad, T, C, bb)
    gs = pltpu.PrefetchScalarGridSpec(
        num_scalar_prefetch=0,
        grid=grid,
        in_specs=[
            pl.BlockSpec((bb, T, C), lambda i: (i, 0, 0)),
            pl.BlockSpec((L, K, C, C), lambda i: (0, 0, 0, 0)),
            pl.BlockSpec((L, 1, C), lambda i: (0, 0, 0)),
            pl.BlockSpec((L, 1, C), lambda i: (0, 0, 0)),
            pl.BlockSpec((C, G), lambda i: (0, 0)),
            pl.BlockSpec((1, G), lambda i: (0, 0)),
        ],
        out_specs=pl.BlockSpec((bb, T, G), lambda i: (i, 0, 0)),
        scratch_shapes=[pltpu.VMEM((bb, T + 2 * pad, C), jnp.float32)],
    )
    return pl.pallas_call(
        kernel,
        out_shape=jax.ShapeDtypeStruct((B, T, G), jnp.float32),
        grid_spec=gs,
        compiler_params=pltpu.CompilerParams(dimension_semantics=("parallel",)),
    )(x_btc, w, params["scale"], params["shift"], params["wih"], params["bih"])


# ----------------------------------------------------------------------------
# Kernel 2: fused bidirectional masked LSTM (packed-sequence semantics)
# ----------------------------------------------------------------------------
def make_bilstm_kernel(T, H):
    G4 = 4 * H

    def kernel(g_ref, len_ref, whh_ref, o_ref, h_scr, c_scr):
        """g_ref:   (T, B, 8H) precomputed X@Wih + b, [fwd 4H | bwd 4H]
           len_ref: (B, 1) int32 valid lengths
           whh_ref: (2H, 8H) block-diagonal recurrent weight [h_f|h_b] rows
           o_ref:   (T, B, 2H) output, lanes [0:H)=fwd, [H:2H)=bwd; zero for t>=len
           h_scr/c_scr: (B, 2H) state, [fwd | bwd] halves
        """
        h_scr[...] = jnp.zeros_like(h_scr)
        c_scr[...] = jnp.zeros_like(c_scr)
        lens = len_ref[...]          # (B, 1), loaded once (hoisted)
        whh = whh_ref[...]           # (2H, 8H), loaded once (hoisted)

        def cell(g4, c_half):        # PyTorch gate order i, f, g, o
            i = jax.nn.sigmoid(g4[:, 0:H])
            f = jax.nn.sigmoid(g4[:, H:2 * H])
            gg = jnp.tanh(g4[:, 2 * H:3 * H])
            o = jax.nn.sigmoid(g4[:, 3 * H:4 * H])
            c_new = f * c_half + i * gg
            h_new = o * jnp.tanh(c_new)
            return h_new, c_new

        def step(s, carry):
            t_f = s                  # forward direction time index
            t_b = T - 1 - s          # backward direction time index (reversed loop)
            h_old = h_scr[...]
            c_old = c_scr[...]
            # single per-step matmul for both directions (block-diagonal Whh)
            rec = jnp.dot(h_old, whh, preferred_element_type=jnp.float32)  # (B, 8H)
            gf = g_ref[t_f][:, :G4] + rec[:, :G4]
            gb = g_ref[t_b][:, G4:] + rec[:, G4:]
            hf_new, cf_new = cell(gf, c_old[:, :H])
            hb_new, cb_new = cell(gb, c_old[:, H:])
            mf = t_f < lens          # (B, 1) bool
            mb = t_b < lens
            h_scr[...] = jnp.concatenate(
                [jnp.where(mf, hf_new, h_old[:, :H]),
                 jnp.where(mb, hb_new, h_old[:, H:])], axis=-1)
            c_scr[...] = jnp.concatenate(
                [jnp.where(mf, cf_new, c_old[:, :H]),
                 jnp.where(mb, cb_new, c_old[:, H:])], axis=-1)
            # write directly into the two lane-halves of the fused output
            o_ref[t_f, :, :H] = jnp.where(mf, hf_new, 0.0)
            o_ref[t_b, :, H:] = jnp.where(mb, hb_new, 0.0)
            return carry

        jax.lax.fori_loop(0, T, step, 0)

    return kernel


def bilstm(gates_tbg, lens_b1, whh_blk):
    T, B, _ = gates_tbg.shape
    H2 = int(whh_blk.shape[0])   # 2H
    H = H2 // 2
    kernel = make_bilstm_kernel(T, H)
    return pl.pallas_call(
        kernel,
        out_shape=jax.ShapeDtypeStruct((T, B, H2), jnp.float32),
        in_specs=[pl.BlockSpec(memory_space=pltpu.MemorySpace.VMEM)] * 3,
        out_specs=pl.BlockSpec(memory_space=pltpu.MemorySpace.VMEM),
        scratch_shapes=[pltpu.VMEM((B, H2), jnp.float32),
                        pltpu.VMEM((B, H2), jnp.float32)],
    )(gates_tbg, lens_b1, whh_blk)


# ----------------------------------------------------------------------------
# Encoder forward (wrapper)
# ----------------------------------------------------------------------------
def encoder_forward(params, x_bct, input_lengths):
    """x_bct: (B, C, T) as in PyTorch Encoder.forward; returns (B, T, C)."""
    x_btc = jnp.transpose(x_bct, (0, 2, 1)).astype(jnp.float32)   # (B, T, C)
    B, T, _ = x_btc.shape
    gates_btg = conv_gates(x_btc, params)                 # (B, T, 8H)
    gates_tbg = jnp.transpose(gates_btg, (1, 0, 2))       # time-major for recurrence
    lens = input_lengths.reshape(B, 1).astype(jnp.int32)
    out_tbh = bilstm(gates_tbg, lens, params["whh_blk"])  # (T, B, 2H) [fwd|bwd]
    return jnp.transpose(out_tbh, (1, 0, 2))              # (B, T, 2H) == (B, T, C)


# ----------------------------------------------------------------------------
# Pure-JAX reference (same math / same parameter packing) for validation
# ----------------------------------------------------------------------------
def encoder_reference(params, x_bct, input_lengths):
    hi = jax.lax.Precision.HIGHEST
    x = jnp.transpose(x_bct, (0, 2, 1)).astype(jnp.float32)
    B, T, C = x.shape
    H = params["H"]
    pad = params["pad"]
    w, scale, shift = params["w"], params["scale"], params["shift"]
    L, K = int(w.shape[0]), int(w.shape[1])
    for l in range(L):
        xp = jnp.pad(x, ((0, 0), (pad, pad), (0, 0)))
        y = jnp.zeros((B, T, C), jnp.float32)
        for k in range(K):
            y = y + jnp.einsum('btc,co->bto', xp[:, k:k + T, :], w[l, k],
                               precision=hi)
        x = jnp.maximum(y * scale[l] + shift[l], 0.0)
    gates = jnp.einsum('btc,cg->btg', x, params["wih"], precision=hi) + params["bih"]
    lens = input_lengths.astype(jnp.int32)
    whh = params["whh_blk"]
    G4 = 4 * H
    h = jnp.zeros((B, 2 * H), jnp.float32)
    c = jnp.zeros((B, 2 * H), jnp.float32)
    out = jnp.zeros((T, B, 2 * H), jnp.float32)

    def cell(g4, c_half):
        i = jax.nn.sigmoid(g4[:, :H])
        f = jax.nn.sigmoid(g4[:, H:2 * H])
        gg = jnp.tanh(g4[:, 2 * H:3 * H])
        o = jax.nn.sigmoid(g4[:, 3 * H:])
        c_new = f * c_half + i * gg
        return o * jnp.tanh(c_new), c_new

    for s in range(T):
        t_f, t_b = s, T - 1 - s
        rec = jnp.dot(h, whh, precision=hi)
        gf = gates[:, t_f, :G4] + rec[:, :G4]
        gb = gates[:, t_b, G4:] + rec[:, G4:]
        hf, cf = cell(gf, c[:, :H])
        hb, cb = cell(gb, c[:, H:])
        mf = (t_f < lens)[:, None]
        mb = (t_b < lens)[:, None]
        h = jnp.concatenate([jnp.where(mf, hf, h[:, :H]),
                             jnp.where(mb, hb, h[:, H:])], -1)
        c = jnp.concatenate([jnp.where(mf, cf, c[:, :H]),
                             jnp.where(mb, cb, c[:, H:])], -1)
        out = out.at[t_f, :, :H].set(jnp.where(mf, hf, 0.0))
        out = out.at[t_b, :, H:].set(jnp.where(mb, hb, 0.0))
    return jnp.transpose(out, (1, 0, 2))


# ----------------------------------------------------------------------------
# Deterministic parameter init (shapes follow the PyTorch module __init__)
# ----------------------------------------------------------------------------
def init_params(key, C, K, n_convs):
    H = C // 2
    eps = 1e-5
    keys = jax.random.split(key, n_convs * 4 + 2)
    w_list, scale_list, shift_list = [], [], []
    ki = 0
    for _ in range(n_convs):
        w = jax.random.normal(keys[ki], (K, C, C), jnp.float32) / jnp.sqrt(float(C * K)); ki += 1
        bias = 0.01 * jax.random.normal(keys[ki], (C,), jnp.float32); ki += 1
        gamma = 1.0 + 0.05 * jax.random.normal(keys[ki], (C,), jnp.float32); ki += 1
        beta = 0.05 * jax.random.normal(keys[ki], (C,), jnp.float32); ki += 1
        running_mean = jnp.zeros((C,), jnp.float32)
        running_var = jnp.ones((C,), jnp.float32)
        scale = gamma / jnp.sqrt(running_var + eps)
        shift = (bias - running_mean) * scale + beta
        w_list.append(w)
        scale_list.append(scale.reshape(1, C))
        shift_list.append(shift.reshape(1, C))
    w_all = jnp.stack(w_list)          # (L, K, C, C)
    scale_all = jnp.stack(scale_list)  # (L, 1, C)
    shift_all = jnp.stack(shift_list)  # (L, 1, C)

    def lstm_dir(k):
        k1, k2, k3, k4 = jax.random.split(k, 4)
        bound = 1.0 / (H ** 0.5)
        wih = jax.random.uniform(k1, (C, 4 * H), jnp.float32, -bound, bound)
        whh = jax.random.uniform(k2, (H, 4 * H), jnp.float32, -bound, bound)
        b_ih = jax.random.uniform(k3, (4 * H,), jnp.float32, -bound, bound)
        b_hh = jax.random.uniform(k4, (4 * H,), jnp.float32, -bound, bound)
        return wih, whh, (b_ih + b_hh).reshape(1, 4 * H)

    wih_f, whh_f, b_f = lstm_dir(keys[ki])
    wih_b, whh_b, b_b = lstm_dir(keys[ki + 1])
    # combined input weights / bias: columns [fwd i|f|g|o , bwd i|f|g|o]
    wih_comb = jnp.concatenate([wih_f, wih_b], axis=1)     # (C, 8H)
    b_comb = jnp.concatenate([b_f, b_b], axis=1)           # (1, 8H)
    # block-diagonal recurrent weight: rows [h_f | h_b] -> cols [fwd 4H | bwd 4H]
    whh_blk = jnp.zeros((2 * H, 8 * H), jnp.float32)
    whh_blk = whh_blk.at[:H, :4 * H].set(whh_f)
    whh_blk = whh_blk.at[H:, 4 * H:].set(whh_b)

    return {"w": w_all, "scale": scale_all, "shift": shift_all,
            "wih": wih_comb, "bih": b_comb, "whh_blk": whh_blk,
            "pad": (K - 1) // 2, "H": H}


# ----------------------------------------------------------------------------
if __name__ == "__main__":
    # hparams: encoder_embedding_dim=32, encoder_n_convolutions=3, encoder_kernel_size=5
    B, C, T = 2, 32, 16
    K, n_convs = 5, 3
    key = jax.random.PRNGKey(0)
    kp, kx = jax.random.split(key)
    params = init_params(kp, C, K, n_convs)
    x = jax.random.normal(kx, (B, C, T), jnp.float32)
    # pack_padded_sequence expects lengths sorted in decreasing order
    input_lengths = jnp.array([16, 12], dtype=jnp.int32)

    out = encoder_forward(params, x, input_lengths)
    out = jax.block_until_ready(out)
    assert out.shape == (B, T, C), out.shape
    # positions beyond each sequence length must be zero (pad_packed_sequence)
    assert float(jnp.abs(out[1, 12:, :]).max()) == 0.0
    # numerics vs a pure-JAX reference of the same encoder
    ref = encoder_reference(params, x, input_lengths)
    err = float(jnp.max(jnp.abs(out - ref)))
    assert err < 3e-2, f"max abs err {err}"
    print("KERNEL_OK")
</pallas_src>

<mosaic_0001>
module attributes {stable_mosaic.version = 11 : i64} {
  func.func @kernel(%arg0: i32, %arg1: memref<2x16x32xf32, #tpu.memory_space<vmem>>, %arg2: memref<3x5x32x32xf32, #tpu.memory_space<vmem>>, %arg3: memref<3x1x32xf32, #tpu.memory_space<vmem>>, %arg4: memref<3x1x32xf32, #tpu.memory_space<vmem>>, %arg5: memref<32x128xf32, #tpu.memory_space<vmem>>, %arg6: memref<1x128xf32, #tpu.memory_space<vmem>>, %arg7: memref<2x16x128xf32, #tpu.memory_space<vmem>>, %arg8: memref<2x20x32xf32, #tpu.memory_space<vmem>>) attributes {dimension_semantics = [#tpu.dimension_semantics<parallel>], iteration_bounds = array<i64: 1>, scalar_prefetch = 0 : i64, scratch_operands = 1 : i64, tpu.core_type = #tpu.core_type<tc>, window_params = [{transform_indices = @transform_0, window_bounds = array<i64: 2, 16, 32>}, {pipeline_mode = #tpu.pipeline_mode<synchronous>, transform_indices = @transform_1, window_bounds = array<i64: 3, 5, 32, 32>}, {pipeline_mode = #tpu.pipeline_mode<synchronous>, transform_indices = @transform_2, window_bounds = array<i64: 3, 1, 32>}, {pipeline_mode = #tpu.pipeline_mode<synchronous>, transform_indices = @transform_3, window_bounds = array<i64: 3, 1, 32>}, {pipeline_mode = #tpu.pipeline_mode<synchronous>, transform_indices = @transform_4, window_bounds = array<i64: 32, 128>}, {pipeline_mode = #tpu.pipeline_mode<synchronous>, transform_indices = @transform_5, window_bounds = array<i64: 1, 128>}, {transform_indices = @transform_6, window_bounds = array<i64: 2, 16, 128>}]} {
    %cst = arith.constant 0.000000e+00 : f32
    %0 = vector.broadcast %cst : f32 to vector<2x20x32xf32>
    %c0 = arith.constant 0 : index
    %c0_0 = arith.constant 0 : index
    %c0_1 = arith.constant 0 : index
    %1 = vector.load %arg8[%c0, %c0_0, %c0_1] : memref<2x20x32xf32, #tpu.memory_space<vmem>>, vector<2x20x32xf32>
    tpu.vector_store %arg8[%c0, %c0_0, %c0_1], %0 {strides = array<i32>} : memref<2x20x32xf32, #tpu.memory_space<vmem>>, vector<2x20x32xf32>,
    %c0_2 = arith.constant 0 : index
    %c0_3 = arith.constant 0 : index
    %c0_4 = arith.constant 0 : index
    %2 = vector.load %arg1[%c0_2, %c0_3, %c0_4] : memref<2x16x32xf32, #tpu.memory_space<vmem>>, vector<2x16x32xf32>
    %c0_5 = arith.constant 0 : index
    %c2 = arith.constant 2 : index
    %c0_6 = arith.constant 0 : index
    %3 = vector.load %arg8[%c0_5, %c2, %c0_6] : memref<2x20x32xf32, #tpu.memory_space<vmem>>, vector<2x16x32xf32>
    tpu.vector_store %arg8[%c0_5, %c2, %c0_6], %2 {strides = array<i32>} : memref<2x20x32xf32, #tpu.memory_space<vmem>>, vector<2x16x32xf32>,
    %c0_7 = arith.constant 0 : index
    %c0_8 = arith.constant 0 : index
    %c0_9 = arith.constant 0 : index
    %4 = vector.load %arg8[%c0_7, %c0_8, %c0_9] : memref<2x20x32xf32, #tpu.memory_space<vmem>>, vector<2x20x32xf32>
    %cst_10 = arith.constant 0.000000e+00 : f32
    %5 = vector.broadcast %cst_10 : f32 to vector<32x32xf32>
    %6 = vector.extract_strided_slice %4 {offsets = [0, 0, 0], sizes = [2, 16, 32], strides = [1, 1, 1]} : vector<2x20x32xf32> to vector<2x16x32xf32>
    %7 = vector.shape_cast %6 : vector<2x16x32xf32> to vector<32x32xf32>
    %c0_11 = arith.constant 0 : index
    %c0_12 = arith.constant 0 : index
    %c0_13 = arith.constant 0 : index
    %c0_14 = arith.constant 0 : index
    %8 = vector.load %arg2[%c0_11, %c0_12, %c0_13, %c0_14] : memref<3x5x32x32xf32, #tpu.memory_space<vmem>>, vector<1x1x32x32xf32>
    %9 = vector.shape_cast %8 : vector<1x1x32x32xf32> to vector<32x32xf32>
    %cst_15 = arith.constant dense<0.000000e+00> : vector<32x32xf32>
    %10 = tpu.matmul %7, %9, %cst_15 {dimension_numbers = #tpu.dot_dimension_numbers<[1], [0], [0], [1], [0, 0, 1, 1], [], []>} : vector<32x32xf32>, vector<32x32xf32>, vector<32x32xf32> -> vector<32x32xf32>
    %11 = arith.addf %5, %10 : vector<32x32xf32>
    %12 = vector.extract_strided_slice %4 {offsets = [0, 1, 0], sizes = [2, 16, 32], strides = [1, 1, 1]} : vector<2x20x32xf32> to vector<2x16x32xf32>
    %13 = vector.shape_cast %12 : vector<2x16x32xf32> to vector<32x32xf32>
    %c0_16 = arith.constant 0 : index
    %c1 = arith.constant 1 : index
    %c0_17 = arith.constant 0 : index
    %c0_18 = arith.constant 0 : index
    %14 = vector.load %arg2[%c0_16, %c1, %c0_17, %c0_18] : memref<3x5x32x32xf32, #tpu.memory_space<vmem>>, vector<1x1x32x32xf32>
    %15 = vector.shape_cast %14 : vector<1x1x32x32xf32> to vector<32x32xf32>
    %cst_19 = arith.constant dense<0.000000e+00> : vector<32x32xf32>
    %16 = tpu.matmul %13, %15, %cst_19 {dimension_numbers = #tpu.dot_dimension_numbers<[1], [0], [0], [1], [0, 0, 1, 1], [], []>} : vector<32x32xf32>, vector<32x32xf32>, vector<32x32xf32> -> vector<32x32xf32>
    %17 = arith.addf %11, %16 : vector<32x32xf32>
    %18 = vector.extract_strided_slice %4 {offsets = [0, 2, 0], sizes = [2, 16, 32], strides = [1, 1, 1]} : vector<2x20x32xf32> to vector<2x16x32xf32>
    %19 = vector.shape_cast %18 : vector<2x16x32xf32> to vector<32x32xf32>
    %c0_20 = arith.constant 0 : index
    %c2_21 = arith.constant 2 : index
    %c0_22 = arith.constant 0 : index
    %c0_23 = arith.constant 0 : index
    %20 = vector.load %arg2[%c0_20, %c2_21, %c0_22, %c0_23] : memref<3x5x32x32xf32, #tpu.memory_space<vmem>>, vector<1x1x32x32xf32>
    %21 = vector.shape_cast %20 : vector<1x1x32x32xf32> to vector<32x32xf32>
    %cst_24 = arith.constant dense<0.000000e+00> : vector<32x32xf32>
    %22 = tpu.matmul %19, %21, %cst_24 {dimension_numbers = #tpu.dot_dimension_numbers<[1], [0], [0], [1], [0, 0, 1, 1], [], []>} : vector<32x32xf32>, vector<32x32xf32>, vector<32x32xf32> -> vector<32x32xf32>
    %23 = arith.addf %17, %22 : vector<32x32xf32>
    %24 = vector.extract_strided_slice %4 {offsets = [0, 3, 0], sizes = [2, 16, 32], strides = [1, 1, 1]} : vector<2x20x32xf32> to vector<2x16x32xf32>
    %25 = vector.shape_cast %24 : vector<2x16x32xf32> to vector<32x32xf32>
    %c0_25 = arith.constant 0 : index
    %c3 = arith.constant 3 : index
    %c0_26 = arith.constant 0 : index
    %c0_27 = arith.constant 0 : index
    %26 = vector.load %arg2[%c0_25, %c3, %c0_26, %c0_27] : memref<3x5x32x32xf32, #tpu.memory_space<vmem>>, vector<1x1x32x32xf32>
    %27 = vector.shape_cast %26 : vector<1x1x32x32xf32> to vector<32x32xf32>
    %cst_28 = arith.constant dense<0.000000e+00> : vector<32x32xf32>
    %28 = tpu.matmul %25, %27, %cst_28 {dimension_numbers = #tpu.dot_dimension_numbers<[1], [0], [0], [1], [0, 0, 1, 1], [], []>} : vector<32x32xf32>, vector<32x32xf32>, vector<32x32xf32> -> vector<32x32xf32>
    %29 = arith.addf %23, %28 : vector<32x32xf32>
    %30 = vector.extract_strided_slice %4 {offsets = [0, 4, 0], sizes = [2, 16, 32], strides = [1, 1, 1]} : vector<2x20x32xf32> to vector<2x16x32xf32>
    %31 = vector.shape_cast %30 : vector<2x16x32xf32> to vector<32x32xf32>
    %c0_29 = arith.constant 0 : index
    %c4 = arith.constant 4 : index
    %c0_30 = arith.constant 0 : index
    %c0_31 = arith.constant 0 : index
    %32 = vector.load %arg2[%c0_29, %c4, %c0_30, %c0_31] : memref<3x5x32x32xf32, #tpu.memory_space<vmem>>, vector<1x1x32x32xf32>
    %33 = vector.shape_cast %32 : vector<1x1x32x32xf32> to vector<32x32xf32>
    %cst_32 = arith.constant dense<0.000000e+00> : vector<32x32xf32>
    %34 = tpu.matmul %31, %33, %cst_32 {dimension_numbers = #tpu.dot_dimension_numbers<[1], [0], [0], [1], [0, 0, 1, 1], [], []>} : vector<32x32xf32>, vector<32x32xf32>, vector<32x32xf32> -> vector<32x32xf32>
    %35 = arith.addf %29, %34 : vector<32x32xf32>
    %c0_33 = arith.constant 0 : index
    %c0_34 = arith.constant 0 : index
    %c0_35 = arith.constant 0 : index
    %36 = vector.load %arg3[%c0_33, %c0_34, %c0_35] : memref<3x1x32xf32, #tpu.memory_space<vmem>>, vector<1x1x32xf32>
    %37 = vector.shape_cast %36 : vector<1x1x32xf32> to vector<1x32xf32>
    %38 = vector.broadcast %37 : vector<1x32xf32> to vector<32x32xf32>
    %39 = arith.mulf %35, %38 : vector<32x32xf32>
    %c0_36 = arith.constant 0 : index
    %c0_37 = arith.constant 0 : index
    %c0_38 = arith.constant 0 : index
    %40 = vector.load %arg4[%c0_36, %c0_37, %c0_38] : memref<3x1x32xf32, #tpu.memory_space<vmem>>, vector<1x1x32xf32>
    %41 = vector.shape_cast %40 : vector<1x1x32xf32> to vector<1x32xf32>
    %42 = vector.broadcast %41 : vector<1x32xf32> to vector<32x32xf32>
    %43 = arith.addf %39, %42 : vector<32x32xf32>
    %cst_39 = arith.constant 0.000000e+00 : f32
    %44 = vector.broadcast %cst_39 : f32 to vector<32x32xf32>
    %45 = arith.maximumf %43, %44 : vector<32x32xf32>
    %46 = vector.shape_cast %45 : vector<32x32xf32> to vector<2x16x32xf32>
    %c0_40 = arith.constant 0 : index
    %c2_41 = arith.constant 2 : index
    %c0_42 = arith.constant 0 : index
    %47 = vector.load %arg8[%c0_40, %c2_41, %c0_42] : memref<2x20x32xf32, #tpu.memory_space<vmem>>, vector<2x16x32xf32>
    tpu.vector_store %arg8[%c0_40, %c2_41, %c0_42], %46 {strides = array<i32>} : memref<2x20x32xf32, #tpu.memory_space<vmem>>, vector<2x16x32xf32>,
    %c0_43 = arith.constant 0 : index
    %c0_44 = arith.constant 0 : index
    %c0_45 = arith.constant 0 : index
    %48 = vector.load %arg8[%c0_43, %c0_44, %c0_45] : memref<2x20x32xf32, #tpu.memory_space<vmem>>, vector<2x20x32xf32>
    %cst_46 = arith.constant 0.000000e+00 : f32
    %49 = vector.broadcast %cst_46 : f32 to vector<32x32xf32>
    %50 = vector.extract_strided_slice %48 {offsets = [0, 0, 0], sizes = [2, 16, 32], strides = [1, 1, 1]} : vector<2x20x32xf32> to vector<2x16x32xf32>
    %51 = vector.shape_cast %50 : vector<2x16x32xf32> to vector<32x32xf32>
    %c1_47 = arith.constant 1 : index
    %c0_48 = arith.constant 0 : index
    %c0_49 = arith.constant 0 : index
    %c0_50 = arith.constant 0 : index
    %52 = vector.load %arg2[%c1_47, %c0_48, %c0_49, %c0_50] : memref<3x5x32x32xf32, #tpu.memory_space<vmem>>, vector<1x1x32x32xf32>
    %53 = vector.shape_cast %52 : vector<1x1x32x32xf32> to vector<32x32xf32>
    %cst_51 = arith.constant dense<0.000000e+00> : vector<32x32xf32>
    %54 = tpu.matmul %51, %53, %cst_51 {dimension_numbers = #tpu.dot_dimension_numbers<[1], [0], [0], [1], [0, 0, 1, 1], [], []>} : vector<32x32xf32>, vector<32x32xf32>, vector<32x32xf32> -> vector<32x32xf32>
    %55 = arith.addf %49, %54 : vector<32x32xf32>
    %56 = vector.extract_strided_slice %48 {offsets = [0, 1, 0], sizes = [2, 16, 32], strides = [1, 1, 1]} : vector<2x20x32xf32> to vector<2x16x32xf32>
    %57 = vector.shape_cast %56 : vector<2x16x32xf32> to vector<32x32xf32>
    %c1_52 = arith.constant 1 : index
    %c1_53 = arith.constant 1 : index
    %c0_54 = arith.constant 0 : index
    %c0_55 = arith.constant 0 : index
    %58 = vector.load %arg2[%c1_52, %c1_53, %c0_54, %c0_55] : memref<3x5x32x32xf32, #tpu.memory_space<vmem>>, vector<1x1x32x32xf32>
    %59 = vector.shape_cast %58 : vector<1x1x32x32xf32> to vector<32x32xf32>
    %cst_56 = arith.constant dense<0.000000e+00> : vector<32x32xf32>
    %60 = tpu.matmul %57, %59, %cst_56 {dimension_numbers = #tpu.dot_dimension_numbers<[1], [0], [0], [1], [0, 0, 1, 1], [], []>} : vector<32x32xf32>, vector<32x32xf32>, vector<32x32xf32> -> vector<32x32xf32>
    %61 = arith.addf %55, %60 : vector<32x32xf32>
    %62 = vector.extract_strided_slice %48 {offsets = [0, 2, 0], sizes = [2, 16, 32], strides = [1, 1, 1]} : vector<2x20x32xf32> to vector<2x16x32xf32>
    %63 = vector.shape_cast %62 : vector<2x16x32xf32> to vector<32x32xf32>
    %c1_57 = arith.constant 1 : index
    %c2_58 = arith.constant 2 : index
    %c0_59 = arith.constant 0 : index
    %c0_60 = arith.constant 0 : index
    %64 = vector.load %arg2[%c1_57, %c2_58, %c0_59, %c0_60] : memref<3x5x32x32xf32, #tpu.memory_space<vmem>>, vector<1x1x32x32xf32>
    %65 = vector.shape_cast %64 : vector<1x1x32x32xf32> to vector<32x32xf32>
    %cst_61 = arith.constant dense<0.000000e+00> : vector<32x32xf32>
    %66 = tpu.matmul %63, %65, %cst_61 {dimension_numbers = #tpu.dot_dimension_numbers<[1], [0], [0], [1], [0, 0, 1, 1], [], []>} : vector<32x32xf32>, vector<32x32xf32>, vector<32x32xf32> -> vector<32x32xf32>
    %67 = arith.addf %61, %66 : vector<32x32xf32>
    %68 = vector.extract_strided_slice %48 {offsets = [0, 3, 0], sizes = [2, 16, 32], strides = [1, 1, 1]} : vector<2x20x32xf32> to vector<2x16x32xf32>
    %69 = vector.shape_cast %68 : vector<2x16x32xf32> to vector<32x32xf32>
    %c1_62 = arith.constant 1 : index
    %c3_63 = arith.constant 3 : index
    %c0_64 = arith.constant 0 : index
    %c0_65 = arith.constant 0 : index
    %70 = vector.load %arg2[%c1_62, %c3_63, %c0_64, %c0_65] : memref<3x5x32x32xf32, #tpu.memory_space<vmem>>, vector<1x1x32x32xf32>
    %71 = vector.shape_cast %70 : vector<1x1x32x32xf32> to vector<32x32xf32>
    %cst_66 = arith.constant dense<0.000000e+00> : vector<32x32xf32>
    %72 = tpu.matmul %69, %71, %cst_66 {dimension_numbers = #tpu.dot_dimension_numbers<[1], [0], [0], [1], [0, 0, 1, 1], [], []>} : vector<32x32xf32>, vector<32x32xf32>, vector<32x32xf32> -> vector<32x32xf32>
    %73 = arith.addf %67, %72 : vector<32x32xf32>
    %74 = vector.extract_strided_slice %48 {offsets = [0, 4, 0], sizes = [2, 16, 32], strides = [1, 1, 1]} : vector<2x20x32xf32> to vector<2x16x32xf32>
    %75 = vector.shape_cast %74 : vector<2x16x32xf32> to vector<32x32xf32>
    %c1_67 = arith.constant 1 : index
    %c4_68 = arith.constant 4 : index
    %c0_69 = arith.constant 0 : index
    %c0_70 = arith.constant 0 : index
    %76 = vector.load %arg2[%c1_67, %c4_68, %c0_69, %c0_70] : memref<3x5x32x32xf32, #tpu.memory_space<vmem>>, vector<1x1x32x32xf32>
    %77 = vector.shape_cast %76 : vector<1x1x32x32xf32> to vector<32x32xf32>
    %cst_71 = arith.constant dense<0.000000e+00> : vector<32x32xf32>
    %78 = tpu.matmul %75, %77, %cst_71 {dimension_numbers = #tpu.dot_dimension_numbers<[1], [0], [0], [1], [0, 0, 1, 1], [], []>} : vector<32x32xf32>, vector<32x32xf32>, vector<32x32xf32> -> vector<32x32xf32>
    %79 = arith.addf %73, %78 : vector<32x32xf32>
    %c1_72 = arith.constant 1 : index
    %c0_73 = arith.constant 0 : index
    %c0_74 = arith.constant 0 : index
    %80 = vector.load %arg3[%c1_72, %c0_73, %c0_74] : memref<3x1x32xf32, #tpu.memory_space<vmem>>, vector<1x1x32xf32>
    %81 = vector.shape_cast %80 : vector<1x1x32xf32> to vector<1x32xf32>
    %82 = vector.broadcast %81 : vector<1x32xf32> to vector<32x32xf32>
    %83 = arith.mulf %79, %82 : vector<32x32xf32>
    %c1_75 = arith.constant 1 : index
    %c0_76 = arith.constant 0 : index
    %c0_77 = arith.constant 0 : index
    %84 = vector.load %arg4[%c1_75, %c0_76, %c0_77] : memref<3x1x32xf32, #tpu.memory_space<vmem>>, vector<1x1x32xf32>
    %85 = vector.shape_cast %84 : vector<1x1x32xf32> to vector<1x32xf32>
    %86 = vector.broadcast %85 : vector<1x32xf32> to vector<32x32xf32>
    %87 = arith.addf %83, %86 : vector<32x32xf32>
    %cst_78 = arith.constant 0.000000e+00 : f32
    %88 = vector.broadcast %cst_78 : f32 to vector<32x32xf32>
    %89 = arith.maximumf %87, %88 : vector<32x32xf32>
    %90 = vector.shape_cast %89 : vector<32x32xf32> to vector<2x16x32xf32>
    %c0_79 = arith.constant 0 : index
    %c2_80 = arith.constant 2 : index
    %c0_81 = arith.constant 0 : index
    %91 = vector.load %arg8[%c0_79, %c2_80, %c0_81] : memref<2x20x32xf32, #tpu.memory_space<vmem>>, vector<2x16x32xf32>
    tpu.vector_store %arg8[%c0_79, %c2_80, %c0_81], %90 {strides = array<i32>} : memref<2x20x32xf32, #tpu.memory_space<vmem>>, vector<2x16x32xf32>,
    %c0_82 = arith.constant 0 : index
    %c0_83 = arith.constant 0 : index
    %c0_84 = arith.constant 0 : index
    %92 = vector.load %arg8[%c0_82, %c0_83, %c0_84] : memref<2x20x32xf32, #tpu.memory_space<vmem>>, vector<2x20x32xf32>
    %cst_85 = arith.constant 0.000000e+00 : f32
    %93 = vector.broadcast %cst_85 : f32 to vector<32x32xf32>
    %94 = vector.extract_strided_slice %92 {offsets = [0, 0, 0], sizes = [2, 16, 32], strides = [1, 1, 1]} : vector<2x20x32xf32> to vector<2x16x32xf32>
    %95 = vector.shape_cast %94 : vector<2x16x32xf32> to vector<32x32xf32>
    %c2_86 = arith.constant 2 : index
    %c0_87 = arith.constant 0 : index
    %c0_88 = arith.constant 0 : index
    %c0_89 = arith.constant 0 : index
    %96 = vector.load %arg2[%c2_86, %c0_87, %c0_88, %c0_89] : memref<3x5x32x32xf32, #tpu.memory_space<vmem>>, vector<1x1x32x32xf32>
    %97 = vector.shape_cast %96 : vector<1x1x32x32xf32> to vector<32x32xf32>
    %cst_90 = arith.constant dense<0.000000e+00> : vector<32x32xf32>
    %98 = tpu.matmul %95, %97, %cst_90 {dimension_numbers = #tpu.dot_dimension_numbers<[1], [0], [0], [1], [0, 0, 1, 1], [], []>} : vector<32x32xf32>, vector<32x32xf32>, vector<32x32xf32> -> vector<32x32xf32>
    %99 = arith.addf %93, %98 : vector<32x32xf32>
    %100 = vector.extract_strided_slice %92 {offsets = [0, 1, 0], sizes = [2, 16, 32], strides = [1, 1, 1]} : vector<2x20x32xf32> to vector<2x16x32xf32>
    %101 = vector.shape_cast %100 : vector<2x16x32xf32> to vector<32x32xf32>
    %c2_91 = arith.constant 2 : index
    %c1_92 = arith.constant 1 : index
    %c0_93 = arith.constant 0 : index
    %c0_94 = arith.constant 0 : index
    %102 = vector.load %arg2[%c2_91, %c1_92, %c0_93, %c0_94] : memref<3x5x32x32xf32, #tpu.memory_space<vmem>>, vector<1x1x32x32xf32>
    %103 = vector.shape_cast %102 : vector<1x1x32x32xf32> to vector<32x32xf32>
    %cst_95 = arith.constant dense<0.000000e+00> : vector<32x32xf32>
    %104 = tpu.matmul %101, %103, %cst_95 {dimension_numbers = #tpu.dot_dimension_numbers<[1], [0], [0], [1], [0, 0, 1, 1], [], []>} : vector<32x32xf32>, vector<32x32xf32>, vector<32x32xf32> -> vector<32x32xf32>
    %105 = arith.addf %99, %104 : vector<32x32xf32>
    %106 = vector.extract_strided_slice %92 {offsets = [0, 2, 0], sizes = [2, 16, 32], strides = [1, 1, 1]} : vector<2x20x32xf32> to vector<2x16x32xf32>
    %107 = vector.shape_cast %106 : vector<2x16x32xf32> to vector<32x32xf32>
    %c2_96 = arith.constant 2 : index
    %c2_97 = arith.constant 2 : index
    %c0_98 = arith.constant 0 : index
    %c0_99 = arith.constant 0 : index
    %108 = vector.load %arg2[%c2_96, %c2_97, %c0_98, %c0_99] : memref<3x5x32x32xf32, #tpu.memory_space<vmem>>, vector<1x1x32x32xf32>
    %109 = vector.shape_cast %108 : vector<1x1x32x32xf32> to vector<32x32xf32>
    %cst_100 = arith.constant dense<0.000000e+00> : vector<32x32xf32>
    %110 = tpu.matmul %107, %109, %cst_100 {dimension_numbers = #tpu.dot_dimension_numbers<[1], [0], [0], [1], [0, 0, 1, 1], [], []>} : vector<32x32xf32>, vector<32x32xf32>, vector<32x32xf32> -> vector<32x32xf32>
    %111 = arith.addf %105, %110 : vector<32x32xf32>
    %112 = vector.extract_strided_slice %92 {offsets = [0, 3, 0], sizes = [2, 16, 32], strides = [1, 1, 1]} : vector<2x20x32xf32> to vector<2x16x32xf32>
    %113 = vector.shape_cast %112 : vector<2x16x32xf32> to vector<32x32xf32>
    %c2_101 = arith.constant 2 : index
    %c3_102 = arith.constant 3 : index
    %c0_103 = arith.constant 0 : index
    %c0_104 = arith.constant 0 : index
    %114 = vector.load %arg2[%c2_101, %c3_102, %c0_103, %c0_104] : memref<3x5x32x32xf32, #tpu.memory_space<vmem>>, vector<1x1x32x32xf32>
    %115 = vector.shape_cast %114 : vector<1x1x32x32xf32> to vector<32x32xf32>
    %cst_105 = arith.constant dense<0.000000e+00> : vector<32x32xf32>
    %116 = tpu.matmul %113, %115, %cst_105 {dimension_numbers = #tpu.dot_dimension_numbers<[1], [0], [0], [1], [0, 0, 1, 1], [], []>} : vector<32x32xf32>, vector<32x32xf32>, vector<32x32xf32> -> vector<32x32xf32>
    %117 = arith.addf %111, %116 : vector<32x32xf32>
    %118 = vector.extract_strided_slice %92 {offsets = [0, 4, 0], sizes = [2, 16, 32], strides = [1, 1, 1]} : vector<2x20x32xf32> to vector<2x16x32xf32>
    %119 = vector.shape_cast %118 : vector<2x16x32xf32> to vector<32x32xf32>
    %c2_106 = arith.constant 2 : index
    %c4_107 = arith.constant 4 : index
    %c0_108 = arith.constant 0 : index
    %c0_109 = arith.constant 0 : index
    %120 = vector.load %arg2[%c2_106, %c4_107, %c0_108, %c0_109] : memref<3x5x32x32xf32, #tpu.memory_space<vmem>>, vector<1x1x32x32xf32>
    %121 = vector.shape_cast %120 : vector<1x1x32x32xf32> to vector<32x32xf32>
    %cst_110 = arith.constant dense<0.000000e+00> : vector<32x32xf32>
    %122 = tpu.matmul %119, %121, %cst_110 {dimension_numbers = #tpu.dot_dimension_numbers<[1], [0], [0], [1], [0, 0, 1, 1], [], []>} : vector<32x32xf32>, vector<32x32xf32>, vector<32x32xf32> -> vector<32x32xf32>
    %123 = arith.addf %117, %122 : vector<32x32xf32>
    %c2_111 = arith.constant 2 : index
    %c0_112 = arith.constant 0 : index
    %c0_113 = arith.constant 0 : index
    %124 = vector.load %arg3[%c2_111, %c0_112, %c0_113] : memref<3x1x32xf32, #tpu.memory_space<vmem>>, vector<1x1x32xf32>
    %125 = vector.shape_cast %124 : vector<1x1x32xf32> to vector<1x32xf32>
    %126 = vector.broadcast %125 : vector<1x32xf32> to vector<32x32xf32>
    %127 = arith.mulf %123, %126 : vector<32x32xf32>
    %c2_114 = arith.constant 2 : index
    %c0_115 = arith.constant 0 : index
    %c0_116 = arith.constant 0 : index
    %128 = vector.load %arg4[%c2_114, %c0_115, %c0_116] : memref<3x1x32xf32, #tpu.memory_space<vmem>>, vector<1x1x32xf32>
    %129 = vector.shape_cast %128 : vector<1x1x32xf32> to vector<1x32xf32>
    %130 = vector.broadcast %129 : vector<1x32xf32> to vector<32x32xf32>
    %131 = arith.addf %127, %130 : vector<32x32xf32>
    %cst_117 = arith.constant 0.000000e+00 : f32
    %132 = vector.broadcast %cst_117 : f32 to vector<32x32xf32>
    %133 = arith.maximumf %131, %132 : vector<32x32xf32>
    %c0_118 = arith.constant 0 : index
    %c0_119 = arith.constant 0 : index
    %134 = vector.load %arg5[%c0_118, %c0_119] : memref<32x128xf32, #tpu.memory_space<vmem>>, vector<32x128xf32>
    %cst_120 = arith.constant dense<0.000000e+00> : vector<32x128xf32>
    %135 = tpu.matmul %133, %134, %cst_120 {dimension_numbers = #tpu.dot_dimension_numbers<[1], [0], [0], [1], [0, 0, 1, 1], [], []>} : vector<32x32xf32>, vector<32x128xf32>, vector<32x128xf32> -> vector<32x128xf32>
    %c0_121 = arith.constant 0 : index
    %c0_122 = arith.constant 0 : index
    %136 = vector.load %arg6[%c0_121, %c0_122] : memref<1x128xf32, #tpu.memory_space<vmem>>, vector<1x128xf32>
    %137 = vector.broadcast %136 : vector<1x128xf32> to vector<32x128xf32>
    %138 = arith.addf %135, %137 : vector<32x128xf32>
    %139 = vector.shape_cast %138 : vector<32x128xf32> to vector<2x16x128xf32>
    %c0_123 = arith.constant 0 : index
    %c0_124 = arith.constant 0 : index
    %c0_125 = arith.constant 0 : index
    %140 = vector.load %arg7[%c0_123, %c0_124, %c0_125] : memref<2x16x128xf32, #tpu.memory_space<vmem>>, vector<2x16x128xf32>
    tpu.vector_store %arg7[%c0_123, %c0_124, %c0_125], %139 {strides = array<i32>} : memref<2x16x128xf32, #tpu.memory_space<vmem>>, vector<2x16x128xf32>,
    return
  }
  func.func @transform_0(%arg0: i32) -> (i32, i32, i32) {
    %c0_i32 = arith.constant 0 : i32
    %c0_i32_0 = arith.constant 0 : i32
    %c0_i32_1 = arith.constant 0 : i32
    return %arg0, %c0_i32, %c0_i32_0 : i32, i32, i32
  }
  func.func @transform_1(%arg0: i32) -> (i32, i32, i32, i32) {
    %c0_i32 = arith.constant 0 : i32
    %c0_i32_0 = arith.constant 0 : i32
    %c0_i32_1 = arith.constant 0 : i32
    %c0_i32_2 = arith.constant 0 : i32
    %c0_i32_3 = arith.constant 0 : i32
    return %c0_i32, %c0_i32_0, %c0_i32_1, %c0_i32_2 : i32, i32, i32, i32
  }
  func.func @transform_2(%arg0: i32) -> (i32, i32, i32) {
    %c0_i32 = arith.constant 0 : i32
    %c0_i32_0 = arith.constant 0 : i32
    %c0_i32_1 = arith.constant 0 : i32
    %c0_i32_2 = arith.constant 0 : i32
    return %c0_i32, %c0_i32_0, %c0_i32_1 : i32, i32, i32
  }
  func.func @transform_3(%arg0: i32) -> (i32, i32, i32) {
    %c0_i32 = arith.constant 0 : i32
    %c0_i32_0 = arith.constant 0 : i32
    %c0_i32_1 = arith.constant 0 : i32
    %c0_i32_2 = arith.constant 0 : i32
    return %c0_i32, %c0_i32_0, %c0_i32_1 : i32, i32, i32
  }
  func.func @transform_4(%arg0: i32) -> (i32, i32) {
    %c0_i32 = arith.constant 0 : i32
    %c0_i32_0 = arith.constant 0 : i32
    %c0_i32_1 = arith.constant 0 : i32
    return %c0_i32, %c0_i32_0 : i32, i32
  }
  func.func @transform_5(%arg0: i32) -> (i32, i32) {
    %c0_i32 = arith.constant 0 : i32
    %c0_i32_0 = arith.constant 0 : i32
    %c0_i32_1 = arith.constant 0 : i32
    return %c0_i32, %c0_i32_0 : i32, i32
  }
  func.func @transform_6(%arg0: i32) -> (i32, i32, i32) {
    %c0_i32 = arith.constant 0 : i32
    %c0_i32_0 = arith.constant 0 : i32
    %c0_i32_1 = arith.constant 0 : i32
    return %arg0, %c0_i32, %c0_i32_0 : i32, i32, i32
  }
}

</mosaic_0001>

<llo_original>
// kernel: tpu_custom_call.1
$region0: #{tpu_custom_call.1}
  #allocation0 [shape = 'u32[]', space=smem, size = 0x4, offset = 0x4, fixed_abs, tag = 'smem constant byte address 0x4 - core index']
  #allocation1 [shape = 'u32[144,128]{1,0:T(1,128)}', space=vmem, size = 0x12000, scoped, tag = 'internal scratch']
  #allocation2 [shape = 'f32[2,20,32]{2,1,0:T(8,128)}', space=vmem, size = 0x6000, scoped, tag = 'scratch operand']
  %s0 = inlined_call_operand.hbm [shape: f32[2,16,32], index: 0, kind: input, shape index: {}]
  %s1 = inlined_call_operand.hbm [shape: f32[3,5,32,32], index: 1, kind: input, shape index: {}]
  %s2 = inlined_call_operand.vmem [shape: f32[3,1,32], index: 2, kind: input, shape index: {}]
  %s3 = inlined_call_operand.hbm [shape: f32[3,1,32], index: 3, kind: input, shape index: {}]
  %s4 = inlined_call_operand.hbm [shape: f32[32,128], index: 4, kind: input, shape index: {}]
  %s5 = inlined_call_operand.vmem [shape: f32[1,128], index: 5, kind: input, shape index: {}]
  %s6 = inlined_call_operand.hbm [shape: f32[2,16,128], index: 6, kind: output, shape index: {}]
  %s7 = sld [smem:[#allocation0]]
  $region50: #{tpu_custom_call.1} parent=0
    _
  %s9 = ssub.s32 1, %s7
  %s10 = scalar_select 0, %s9, %s7
  $region1: #{tpu_custom_call.1} parent=0
    #allocation3 [shape = 'u8[16384]{0}', space=vmem, size = 0x4000, scoped, tag = 'input window, operand 0, single buffered']
    #allocation4 [shape = 's32[1]{0}', space=sflag, size = 0x4, scoped, tag = 'scoped memory for tpu_custom_call.1']
    #allocation5 [shape = 's32[1]{0}', space=sflag, size = 0x4, scoped, tag = 'scoped memory for tpu_custom_call.1']
    #allocation6 [shape = 'u8[245760]{0}', space=vmem, size = 0x3c000, scoped, tag = 'input window, operand 1, single buffered']
    #allocation7 [shape = 's32[1]{0}', space=sflag, size = 0x4, scoped, tag = 'scoped memory for tpu_custom_call.1']
    #allocation8 [shape = 'u8[1536]{0}', space=vmem, size = 0x800, scoped, tag = 'input window, operand 3, single buffered']
    #allocation9 [shape = 'u8[16384]{0}', space=vmem, size = 0x4000, scoped, tag = 'input window, operand 4, single buffered']
    #allocation10 [shape = 's32[1]{0}', space=sflag, size = 0x4, scoped, tag = 'scoped memory for tpu_custom_call.1']
    #allocation11 [shape = 'u8[16384]{0}', space=vmem, size = 0x4000, scoped, tag = 'output window, operand 0, single buffered']
    %11 = vsyncpa [#allocation4], 0
    %12 = vsyncpa [#allocation7], 0
    %13 = vsyncpa [#allocation10], 0
    %14 = vsyncpa [#allocation5], 0
    // Predicated region
    $region2: #{tpu_custom_call.1} parent=1 // pred_check
      _
    $region3: #{tpu_custom_call.1} parent=1 // pred_check_branch
      %16 = sbr.rel (0) target = $region5
    $region4: #{tpu_custom_call.1} parent=1 // pred_region
      %s18 = ssub.s32 512, 512
      %19 = vsyncadd [#allocation4], %s18
      %s20 = sshll.u32 [#allocation3], 4
      %s21 = int_to_ptr.vmem [resolvable:$true] %s20
      %26 = dma.hbm_to_vmem [thread:$0]  %s0, 512, %s21, [#allocation4], 128, 128, 8
    $region5: #{tpu_custom_call.1} parent=1 // pred_fallthru
      _
    // Predicated region
    $region6: #{tpu_custom_call.1} parent=1 // pred_check
      _
    $region7: #{tpu_custom_call.1} parent=1 // pred_check_branch
      %28 = sbr.rel (0) target = $region9
    $region8: #{tpu_custom_call.1} parent=1 // pred_region
      %s30 = ssub.s32 7680, 7680
      %31 = vsyncadd [#allocation7], %s30
      %s32 = sshll.u32 [#allocation6], 4
      %s33 = int_to_ptr.vmem [resolvable:$true] %s32
      %38 = dma.hbm_to_vmem [thread:$0]  %s1, 7680, %s33, [#allocation7], 128, 128, 8
    $region9: #{tpu_custom_call.1} parent=1 // pred_fallthru
      _
    // Predicated region
    $region10: #{tpu_custom_call.1} parent=1 // pred_check
      _
    $region11: #{tpu_custom_call.1} parent=1 // pred_check_branch
      %40 = sbr.rel (0) target = $region13
    $region12: #{tpu_custom_call.1} parent=1 // pred_region
      _
    $region13: #{tpu_custom_call.1} parent=1 // pred_fallthru
      _
    // Predicated region
    $region14: #{tpu_custom_call.1} parent=1 // pred_check
      _
    $region15: #{tpu_custom_call.1} parent=1 // pred_check_branch
      %42 = sbr.rel (0) target = $region17
    $region16: #{tpu_custom_call.1} parent=1 // pred_region
      %s44 = ssub.s32 48, 48
      %45 = vsyncadd [#allocation7], %s44
      %s46 = sshll.u32 [#allocation8], 4
      %s47 = int_to_ptr.vmem [resolvable:$true] %s46
      %52 = dma.hbm_to_vmem [thread:$0]  %s3, 48, %s47, [#allocation7], 16, 16, 1
    $region17: #{tpu_custom_call.1} parent=1 // pred_fallthru
      _
    // Predicated region
    $region18: #{tpu_custom_call.1} parent=1 // pred_check
      _
    $region19: #{tpu_custom_call.1} parent=1 // pred_check_branch
      %54 = sbr.rel (0) target = $region21
    $region20: #{tpu_custom_call.1} parent=1 // pred_region
      %s56 = ssub.s32 512, 512
      %57 = vsyncadd [#allocation10], %s56
      %s58 = sshll.u32 [#allocation9], 4
      %s59 = int_to_ptr.vmem [resolvable:$true] %s58
      %64 = dma.hbm_to_vmem [thread:$0]  %s4, 512, %s59, [#allocation10], 128, 128, 8
    $region21: #{tpu_custom_call.1} parent=1 // pred_fallthru
      _
    // Predicated region
    $region22: #{tpu_custom_call.1} parent=1 // pred_check
      _
    $region23: #{tpu_custom_call.1} parent=1 // pred_check_branch
      %66 = sbr.rel (0) target = $region25
    $region24: #{tpu_custom_call.1} parent=1 // pred_region
      _
    $region25: #{tpu_custom_call.1} parent=1 // pred_fallthru
      _
    // Predicated region
    $region26: #{tpu_custom_call.1} parent=1 // pred_check
      _
    $region27: #{tpu_custom_call.1} parent=1 // pred_check_branch
      %68 = sbr.rel (0) target = $region29
    $region28: #{tpu_custom_call.1} parent=1 // pred_region
      %69 = dma.done [#allocation4], 512
    $region29: #{tpu_custom_call.1} parent=1 // pred_fallthru
      _
    // Predicated region
    $region30: #{tpu_custom_call.1} parent=1 // pred_check
      _
    $region31: #{tpu_custom_call.1} parent=1 // pred_check_branch
      %71 = sbr.rel (0) target = $region33
    $region32: #{tpu_custom_call.1} parent=1 // pred_region
      %72 = dma.done [#allocation7], 7680
    $region33: #{tpu_custom_call.1} parent=1 // pred_fallthru
      _
    // Predicated region
    $region34: #{tpu_custom_call.1} parent=1 // pred_check
      _
    $region35: #{tpu_custom_call.1} parent=1 // pred_check_branch
      %74 = sbr.rel (0) target = $region37
    $region36: #{tpu_custom_call.1} parent=1 // pred_region
      %75 = dma.done [#allocation7], 48
    $region37: #{tpu_custom_call.1} parent=1 // pred_fallthru
      _
    // Predicated region
    $region38: #{tpu_custom_call.1} parent=1 // pred_check
      _
    $region39: #{tpu_custom_call.1} parent=1 // pred_check_branch
      %77 = sbr.rel (0) target = $region41
    $region40: #{tpu_custom_call.1} parent=1 // pred_region
      %78 = dma.done [#allocation10], 512
    $region41: #{tpu_custom_call.1} parent=1 // pred_fallthru
      _
    %vm79 = vcmask 261120
    %80 = vst.msk [vmem:[#allocation2] sm:$0xff] %vm79, 0.0
    %81 = vst.msk [vmem:[#allocation2 + $0x8] sm:$0xff] %vm79, 0.0
    %vm82 = vcmask 257024
    %83 = vst.msk [vmem:[#allocation2 + $0x10] sm:$0xf] %vm82, 0.0
    %84 = vst.msk [vmem:[#allocation2 + $0x18] sm:$0xff] %vm79, 0.0
    %85 = vst.msk [vmem:[#allocation2 + $0x20] sm:$0xff] %vm79, 0.0
    %86 = vst.msk [vmem:[#allocation2 + $0x28] sm:$0xf] %vm82, 0.0
    %v87 = vld [vmem:[#allocation3] sm:$0xff]
    %v88 = vld [vmem:[#allocation3 + $0x8] sm:$0xff]
    %v89 = vld [vmem:[#allocation3 + $0x10] sm:$0xff]
    %v90 = vld [vmem:[#allocation3 + $0x18] sm:$0xff]
    %91 = vst.msk [vmem:[#allocation2 + $0x2] sm:$0xff] %vm79, %v87
    %92 = vst.msk [vmem:[#allocation2 + $0xa] sm:$0xff] %vm79, %v88
    %93 = vst.msk [vmem:[#allocation2 + $0x1a] sm:$0xff] %vm79, %v89
    %94 = vst.msk [vmem:[#allocation2 + $0x22] sm:$0xff] %vm79, %v90
    %v95 = vld [vmem:[#allocation2] sm:$0xff]
    %v96 = vld [vmem:[#allocation2 + $0x8] sm:$0xff]
    %v97 = vld [vmem:[#allocation2 + $0x10] sm:$0xf]
    %v98 = vld [vmem:[#allocation2 + $0x18] sm:$0xff]
    %v99 = vld [vmem:[#allocation2 + $0x20] sm:$0xff]
    %v100 = vld [vmem:[#allocation2 + $0x28] sm:$0xf]
    %v101 = vld [vmem:[#allocation6] sm:$0xff]
    %v102 = vld [vmem:[#allocation6 + $0x8] sm:$0xff]
    %v103 = vld [vmem:[#allocation6 + $0x10] sm:$0xff]
    %v104 = vld [vmem:[#allocation6 + $0x18] sm:$0xff]
    %vm111 = vcmask 1046528
    %v112 = vrot.slane %v95, 1
    %v113 = vrot.slane %v96, 1
    %v114 = vsel %vm111, %v112, %v113
    %v115 = vrot.slane %v97, 1
    %v116 = vsel %vm111, %v113, %v115
    %v117 = vrot.slane %v98, 1
    %v118 = vrot.slane %v99, 1
    %v119 = vsel %vm111, %v117, %v118
    %v120 = vrot.slane %v100, 1
    %v121 = vsel %vm111, %v118, %v120
    %s122 = scalar_lea.vmem [#allocation6], 32
    %v123 = vld [vmem:[%s122] sm:$0xff]
    %v124 = vld [vmem:[%s122 + $0x8] sm:$0xff]
    %v125 = vld [vmem:[%s122 + $0x10] sm:$0xff]
    %v126 = vld [vmem:[%s122 + $0x18] sm:$0xff]
    %v127 = vsel %vm79, %v114, 0
    %v129 = vsel %vm79, %v116, 0
    %v131 = vsel %vm79, %v119, 0
    %v133 = vsel %vm79, %v121, 0
    %135 = vmatprep.subr.mxu0 0.0
    %136 = vmatpush1.msra.mxu0 0.0
    %137 = vmatprep.subr.mxu0 0.0
    %138 = vmatpush1.msra.mxu0 0.0
    %139 = vmatprep.subr.mxu0 0.0
    %140 = vmatpush1.msra.mxu0 0.0
    %141 = vmatprep.subr.mxu0 0.0
    %142 = vmatpush1.msra.mxu0 0.0
    %143 = vmatprep.subr.mxu0 0.0
    %144 = vmatpush1.msra.mxu0 0.0
    %145 = vmatprep.subr.mxu0 0.0
    %146 = vmatpush1.msra.mxu0 0.0
    %147 = vmatprep.subr.mxu0 0.0
    %148 = vmatpush1.msra.mxu0 0.0
    %149 = vmatprep.subr.mxu0 0.0
    %150 = vmatpush1.msra.mxu0 0.0
    %151 = vmatprep.subr.mxu0 0.0
    %152 = vmatpush1.msra.mxu0 0.0
    %153 = vmatprep.subr.mxu0 0.0
    %154 = vmatpush1.msra.mxu0 0.0
    %155 = vmatprep.subr.mxu0 0.0
    %156 = vmatpush1.msra.mxu0 0.0
    %157 = vmatprep.subr.mxu0 0.0
    %158 = vmatpush1.msra.mxu0 0.0
    %159 = vmatprep.subr.mxu0 0.0
    %160 = vmatpush1.msra.mxu0 %v126
    %161 = vmatprep.subr.mxu0 0.0
    %162 = vmatpush1.msra.mxu0 %v125
    %163 = vmatprep.subr.mxu0 0.0
    %164 = vmatpush1.msra.mxu0 %v124
    %165 = vmatprep.subr.mxu0 0.0
    %166 = vmatpush1.msra.mxu0 %v123
    %167 = vmatprep.subr.mxu0 0.0
    %168 = vmatpush2.msra.mxu0 0.0
    %169 = vmatprep.subr.mxu0 0.0
    %170 = vmatpush2.msra.mxu0 0.0
    %171 = vmatprep.subr.mxu0 0.0
    %172 = vmatpush2.msra.mxu0 0.0
    %173 = vmatprep.subr.mxu0 0.0
    %174 = vmatpush2.msra.mxu0 0.0
    %175 = vmatprep.subr.mxu0 0.0
    %176 = vmatpush2.msra.mxu0 0.0
    %177 = vmatprep.subr.mxu0 0.0
    %178 = vmatpush2.msra.mxu0 0.0
    %179 = vmatprep.subr.mxu0 0.0
    %180 = vmatpush2.msra.mxu0 0.0
    %181 = vmatprep.subr.mxu0 0.0
    %182 = vmatpush2.msra.mxu0 0.0
    %183 = vmatprep.subr.mxu0 0.0
    %184 = vmatpush2.msra.mxu0 0.0
    %185 = vmatprep.subr.mxu0 0.0
    %186 = vmatpush2.msra.mxu0 0.0
    %187 = vmatprep.subr.mxu0 0.0
    %188 = vmatpush2.msra.mxu0 0.0
    %189 = vmatprep.subr.mxu0 0.0
    %190 = vmatpush2.msra.mxu0 0.0
    %191 = vmatprep.subr.mxu0 0.0
    %192 = vmatpush2.msra.mxu0 0.0
    %193 = vmatprep.subr.mxu0 0.0
    %194 = vmatpush2.msra.mxu0 0.0
    %195 = vmatprep.subr.mxu0 0.0
    %196 = vmatpush2.msra.mxu0 0.0
    %197 = vmatprep.subr.mxu0 0.0
    %198 = vmatpush2.msra.mxu0 0.0
    %199 = vmatprep.mubr.f32.mxu0 0.0
    %200 = vmatmul.mubr.f32.gmra.mxu0 %v127
    %v201 = vpop.f32.mrf.mxu0
    %v202 = vadd.f32 0.0, %v201
    %v203 = vpop.f32.mrf.mxu0
    %204 = vmatprep.mubr.f32.mxu0 0.0
    %205 = vmatmul.mubr.f32.gmra.mxu0 %v129
    %v206 = vpop.f32.mrf.mxu0
    %v207 = vadd.f32 0.0, %v206
    %v208 = vpop.f32.mrf.mxu0
    %209 = vmatprep.mubr.f32.mxu0 0.0
    %210 = vmatmul.mubr.f32.gmra.mxu0 %v131
    %v211 = vpop.f32.mrf.mxu0
    %v212 = vadd.f32 0.0, %v211
    %v213 = vpop.f32.mrf.mxu0
    %214 = vmatprep.mubr.f32.mxu0 0.0
    %215 = vmatmul.mubr.f32.gmra.mxu0 %v133
    %v216 = vpop.f32.mrf.mxu0
    %v217 = vadd.f32 0.0, %v216
    %v218 = vpop.f32.mrf.mxu0
    %219 = vdwg.mxu0
    %v220 = vsel %vm79, %v95, 0
    %v222 = vsel %vm79, %v96, 0
    %v224 = vsel %vm79, %v98, 0
    %v226 = vsel %vm79, %v99, 0
    %228 = vmatprep.subr.mxu0 0.0
    %229 = vmatpush1.msra.mxu0 0.0
    %230 = vmatprep.subr.mxu0 0.0
    %231 = vmatpush1.msra.mxu0 0.0
    %232 = vmatprep.subr.mxu0 0.0
    %233 = vmatpush1.msra.mxu0 0.0
    %234 = vmatprep.subr.mxu0 0.0
    %235 = vmatpush1.msra.mxu0 0.0
    %236 = vmatprep.subr.mxu0 0.0
    %237 = vmatpush1.msra.mxu0 0.0
    %238 = vmatprep.subr.mxu0 0.0
    %239 = vmatpush1.msra.mxu0 0.0
    %240 = vmatprep.subr.mxu0 0.0
    %241 = vmatpush1.msra.mxu0 0.0
    %242 = vmatprep.subr.mxu0 0.0
    %243 = vmatpush1.msra.mxu0 0.0
    %244 = vmatprep.subr.mxu0 0.0
    %245 = vmatpush1.msra.mxu0 0.0
    %246 = vmatprep.subr.mxu0 0.0
    %247 = vmatpush1.msra.mxu0 0.0
    %248 = vmatprep.subr.mxu0 0.0
    %249 = vmatpush1.msra.mxu0 0.0
    %250 = vmatprep.subr.mxu0 0.0
    %251 = vmatpush1.msra.mxu0 0.0
    %252 = vmatprep.subr.mxu0 0.0
    %253 = vmatpush1.msra.mxu0 %v104
    %254 = vmatprep.subr.mxu0 0.0
    %255 = vmatpush1.msra.mxu0 %v103
    %256 = vmatprep.subr.mxu0 0.0
    %257 = vmatpush1.msra.mxu0 %v102
    %258 = vmatprep.subr.mxu0 0.0
    %259 = vmatpush1.msra.mxu0 %v101
    %260 = vmatprep.subr.mxu0 0.0
    %261 = vmatpush2.msra.mxu0 0.0
    %262 = vmatprep.subr.mxu0 0.0
    %263 = vmatpush2.msra.mxu0 0.0
    %264 = vmatprep.subr.mxu0 0.0
    %265 = vmatpush2.msra.mxu0 0.0
    %266 = vmatprep.subr.mxu0 0.0
    %267 = vmatpush2.msra.mxu0 0.0
    %268 = vmatprep.subr.mxu0 0.0
    %269 = vmatpush2.msra.mxu0 0.0
    %270 = vmatprep.subr.mxu0 0.0
    %271 = vmatpush2.msra.mxu0 0.0
    %272 = vmatprep.subr.mxu0 0.0
    %273 = vmatpush2.msra.mxu0 0.0
    %274 = vmatprep.subr.mxu0 0.0
    %275 = vmatpush2.msra.mxu0 0.0
    %276 = vmatprep.subr.mxu0 0.0
    %277 = vmatpush2.msra.mxu0 0.0
    %278 = vmatprep.subr.mxu0 0.0
    %279 = vmatpush2.msra.mxu0 0.0
    %280 = vmatprep.subr.mxu0 0.0
    %281 = vmatpush2.msra.mxu0 0.0
    %282 = vmatprep.subr.mxu0 0.0
    %283 = vmatpush2.msra.mxu0 0.0
    %284 = vmatprep.subr.mxu0 0.0
    %285 = vmatpush2.msra.mxu0 0.0
    %286 = vmatprep.subr.mxu0 0.0
    %287 = vmatpush2.msra.mxu0 0.0
    %288 = vmatprep.subr.mxu0 0.0
    %289 = vmatpush2.msra.mxu0 0.0
    %290 = vmatprep.subr.mxu0 0.0
    %291 = vmatpush2.msra.mxu0 0.0
    %292 = vmatprep.mubr.f32.mxu0 0.0
    %293 = vmatmul.mubr.f32.gmra.mxu0 %v220
    %v294 = vpop.f32.mrf.mxu0
    %v295 = vadd.f32 %v202, %v294
    %v296 = vpop.f32.mrf.mxu0
    %297 = vmatprep.mubr.f32.mxu0 0.0
    %298 = vmatmul.mubr.f32.gmra.mxu0 %v222
    %v299 = vpop.f32.mrf.mxu0
    %v300 = vadd.f32 %v207, %v299
    %v301 = vpop.f32.mrf.mxu0
    %302 = vmatprep.mubr.f32.mxu0 0.0
    %303 = vmatmul.mubr.f32.gmra.mxu0 %v224
    %v304 = vpop.f32.mrf.mxu0
    %v305 = vadd.f32 %v212, %v304
    %v306 = vpop.f32.mrf.mxu0
    %307 = vmatprep.mubr.f32.mxu0 0.0
    %308 = vmatmul.mubr.f32.gmra.mxu0 %v226
    %v309 = vpop.f32.mrf.mxu0
    %v310 = vadd.f32 %v217, %v309
    %v311 = vpop.f32.mrf.mxu0
    %312 = vdwg.mxu0
    %vm313 = vcmask 1045504
    %v314 = vrot.slane %v95, 2
    %v315 = vrot.slane %v96, 2
    %v316 = vsel %vm313, %v314, %v315
    %v317 = vrot.slane %v97, 2
    %v318 = vsel %vm313, %v315, %v317
    %v319 = vrot.slane %v98, 2
    %v320 = vrot.slane %v99, 2
    %v321 = vsel %vm313, %v319, %v320
    %v322 = vrot.slane %v100, 2
    %v323 = vsel %vm313, %v320, %v322
    %s324 = scalar_lea.vmem [#allocation6], 64
    %v325 = vld [vmem:[%s324] sm:$0xff]
    %v326 = vld [vmem:[%s324 + $0x8] sm:$0xff]
    %v327 = vld [vmem:[%s324 + $0x10] sm:$0xff]
    %v328 = vld [vmem:[%s324 + $0x18] sm:$0xff]
    %v329 = vsel %vm79, %v316, 0
    %v331 = vsel %vm79, %v318, 0
    %v333 = vsel %vm79, %v321, 0
    %v335 = vsel %vm79, %v323, 0
    %337 = vmatprep.subr.mxu0 0.0
    %338 = vmatpush1.msra.mxu0 0.0
    %339 = vmatprep.subr.mxu0 0.0
    %340 = vmatpush1.msra.mxu0 0.0
    %341 = vmatprep.subr.mxu0 0.0
    %342 = vmatpush1.msra.mxu0 0.0
    %343 = vmatprep.subr.mxu0 0.0
    %344 = vmatpush1.msra.mxu0 0.0
    %345 = vmatprep.subr.mxu0 0.0
    %346 = vmatpush1.msra.mxu0 0.0
    %347 = vmatprep.subr.mxu0 0.0
    %348 = vmatpush1.msra.mxu0 0.0
    %349 = vmatprep.subr.mxu0 0.0
    %350 = vmatpush1.msra.mxu0 0.0
    %351 = vmatprep.subr.mxu0 0.0
    %352 = vmatpush1.msra.mxu0 0.0
    %353 = vmatprep.subr.mxu0 0.0
    %354 = vmatpush1.msra.mxu0 0.0
    %355 = vmatprep.subr.mxu0 0.0
    %356 = vmatpush1.msra.mxu0 0.0
    %357 = vmatprep.subr.mxu0 0.0
    %358 = vmatpush1.msra.mxu0 0.0
    %359 = vmatprep.subr.mxu0 0.0
    %360 = vmatpush1.msra.mxu0 0.0
    %361 = vmatprep.subr.mxu0 0.0
    %362 = vmatpush1.msra.mxu0 %v328
    %363 = vmatprep.subr.mxu0 0.0
    %364 = vmatpush1.msra.mxu0 %v327
    %365 = vmatprep.subr.mxu0 0.0
    %366 = vmatpush1.msra.mxu0 %v326
    %367 = vmatprep.subr.mxu0 0.0
    %368 = vmatpush1.msra.mxu0 %v325
    %369 = vmatprep.subr.mxu0 0.0
    %370 = vmatpush2.msra.mxu0 0.0
    %371 = vmatprep.subr.mxu0 0.0
    %372 = vmatpush2.msra.mxu0 0.0
    %373 = vmatprep.subr.mxu0 0.0
    %374 = vmatpush2.msra.mxu0 0.0
    %375 = vmatprep.subr.mxu0 0.0
    %376 = vmatpush2.msra.mxu0 0.0
    %377 = vmatprep.subr.mxu0 0.0
    %378 = vmatpush2.msra.mxu0 0.0
    %379 = vmatprep.subr.mxu0 0.0
    %380 = vmatpush2.msra.mxu0 0.0
    %381 = vmatprep.subr.mxu0 0.0
    %382 = vmatpush2.msra.mxu0 0.0
    %383 = vmatprep.subr.mxu0 0.0
    %384 = vmatpush2.msra.mxu0 0.0
    %385 = vmatprep.subr.mxu0 0.0
    %386 = vmatpush2.msra.mxu0 0.0
    %387 = vmatprep.subr.mxu0 0.0
    %388 = vmatpush2.msra.mxu0 0.0
    %389 = vmatprep.subr.mxu0 0.0
    %390 = vmatpush2.msra.mxu0 0.0
    %391 = vmatprep.subr.mxu0 0.0
    %392 = vmatpush2.msra.mxu0 0.0
    %393 = vmatprep.subr.mxu0 0.0
    %394 = vmatpush2.msra.mxu0 0.0
    %395 = vmatprep.subr.mxu0 0.0
    %396 = vmatpush2.msra.mxu0 0.0
    %397 = vmatprep.subr.mxu0 0.0
    %398 = vmatpush2.msra.mxu0 0.0
    %399 = vmatprep.subr.mxu0 0.0
    %400 = vmatpush2.msra.mxu0 0.0
    %401 = vmatprep.mubr.f32.mxu0 0.0
    %402 = vmatmul.mubr.f32.gmra.mxu0 %v329
    %v403 = vpop.f32.mrf.mxu0
    %v404 = vadd.f32 0.0, %v403
    %v405 = vpop.f32.mrf.mxu0
    %406 = vmatprep.mubr.f32.mxu0 0.0
    %407 = vmatmul.mubr.f32.gmra.mxu0 %v331
    %v408 = vpop.f32.mrf.mxu0
    %v409 = vadd.f32 0.0, %v408
    %v410 = vpop.f32.mrf.mxu0
    %411 = vmatprep.mubr.f32.mxu0 0.0
    %412 = vmatmul.mubr.f32.gmra.mxu0 %v333
    %v413 = vpop.f32.mrf.mxu0
    %v414 = vadd.f32 0.0, %v413
    %v415 = vpop.f32.mrf.mxu0
    %416 = vmatprep.mubr.f32.mxu0 0.0
    %417 = vmatmul.mubr.f32.gmra.mxu0 %v335
    %v418 = vpop.f32.mrf.mxu0
    %v419 = vadd.f32 0.0, %v418
    %v420 = vpop.f32.mrf.mxu0
    %421 = vdwg.mxu0
    %v422 = vadd.f32 %v295, %v404
    %v423 = vadd.f32 %v300, %v409
    %v424 = vadd.f32 %v305, %v414
    %v425 = vadd.f32 %v310, %v419
    %vm426 = vcmask 1044480
    %v427 = vrot.slane %v95, 3
    %v428 = vrot.slane %v96, 3
    %v429 = vsel %vm426, %v427, %v428
    %v430 = vrot.slane %v97, 3
    %v431 = vsel %vm426, %v428, %v430
    %v432 = vrot.slane %v98, 3
    %v433 = vrot.slane %v99, 3
    %v434 = vsel %vm426, %v432, %v433
    %v435 = vrot.slane %v100, 3
    %v436 = vsel %vm426, %v433, %v435
    %s437 = scalar_lea.vmem [#allocation6], 96
    %v438 = vld [vmem:[%s437] sm:$0xff]
    %v439 = vld [vmem:[%s437 + $0x8] sm:$0xff]
    %v440 = vld [vmem:[%s437 + $0x10] sm:$0xff]
    %v441 = vld [vmem:[%s437 + $0x18] sm:$0xff]
    %v442 = vsel %vm79, %v429, 0
    %v444 = vsel %vm79, %v431, 0
    %v446 = vsel %vm79, %v434, 0
    %v448 = vsel %vm79, %v436, 0
    %450 = vmatprep.subr.mxu0 0.0
    %451 = vmatpush1.msra.mxu0 0.0
    %452 = vmatprep.subr.mxu0 0.0
    %453 = vmatpush1.msra.mxu0 0.0
    %454 = vmatprep.subr.mxu0 0.0
    %455 = vmatpush1.msra.mxu0 0.0
    %456 = vmatprep.subr.mxu0 0.0
    %457 = vmatpush1.msra.mxu0 0.0
    %458 = vmatprep.subr.mxu0 0.0
    %459 = vmatpush1.msra.mxu0 0.0
    %460 = vmatprep.subr.mxu0 0.0
    %461 = vmatpush1.msra.mxu0 0.0
    %462 = vmatprep.subr.mxu0 0.0
    %463 = vmatpush1.msra.mxu0 0.0
    %464 = vmatprep.subr.mxu0 0.0
    %465 = vmatpush1.msra.mxu0 0.0
    %466 = vmatprep.subr.mxu0 0.0
    %467 = vmatpush1.msra.mxu0 0.0
    %468 = vmatprep.subr.mxu0 0.0
    %469 = vmatpush1.msra.mxu0 0.0
    %470 = vmatprep.subr.mxu0 0.0
    %471 = vmatpush1.msra.mxu0 0.0
    %472 = vmatprep.subr.mxu0 0.0
    %473 = vmatpush1.msra.mxu0 0.0
    %474 = vmatprep.subr.mxu0 0.0
    %475 = vmatpush1.msra.mxu0 %v441
    %476 = vmatprep.subr.mxu0 0.0
    %477 = vmatpush1.msra.mxu0 %v440
    %478 = vmatprep.subr.mxu0 0.0
    %479 = vmatpush1.msra.mxu0 %v439
    %480 = vmatprep.subr.mxu0 0.0
    %481 = vmatpush1.msra.mxu0 %v438
    %482 = vmatprep.subr.mxu0 0.0
    %483 = vmatpush2.msra.mxu0 0.0
    %484 = vmatprep.subr.mxu0 0.0
    %485 = vmatpush2.msra.mxu0 0.0
    %486 = vmatprep.subr.mxu0 0.0
    %487 = vmatpush2.msra.mxu0 0.0
    %488 = vmatprep.subr.mxu0 0.0
    %489 = vmatpush2.msra.mxu0 0.0
    %490 = vmatprep.subr.mxu0 0.0
    %491 = vmatpush2.msra.mxu0 0.0
    %492 = vmatprep.subr.mxu0 0.0
    %493 = vmatpush2.msra.mxu0 0.0
    %494 = vmatprep.subr.mxu0 0.0
    %495 = vmatpush2.msra.mxu0 0.0
    %496 = vmatprep.subr.mxu0 0.0
    %497 = vmatpush2.msra.mxu0 0.0
    %498 = vmatprep.subr.mxu0 0.0
    %499 = vmatpush2.msra.mxu0 0.0
    %500 = vmatprep.subr.mxu0 0.0
    %501 = vmatpush2.msra.mxu0 0.0
    %502 = vmatprep.subr.mxu0 0.0
    %503 = vmatpush2.msra.mxu0 0.0
    %504 = vmatprep.subr.mxu0 0.0
    %505 = vmatpush2.msra.mxu0 0.0
    %506 = vmatprep.subr.mxu0 0.0
    %507 = vmatpush2.msra.mxu0 0.0
    %508 = vmatprep.subr.mxu0 0.0
    %509 = vmatpush2.msra.mxu0 0.0
    %510 = vmatprep.subr.mxu0 0.0
    %511 = vmatpush2.msra.mxu0 0.0
    %512 = vmatprep.subr.mxu0 0.0
    %513 = vmatpush2.msra.mxu0 0.0
    %514 = vmatprep.mubr.f32.mxu0 0.0
    %515 = vmatmul.mubr.f32.gmra.mxu0 %v442
    %v516 = vpop.f32.mrf.mxu0
    %v517 = vadd.f32 0.0, %v516
    %v518 = vpop.f32.mrf.mxu0
    %519 = vmatprep.mubr.f32.mxu0 0.0
    %520 = vmatmul.mubr.f32.gmra.mxu0 %v444
    %v521 = vpop.f32.mrf.mxu0
    %v522 = vadd.f32 0.0, %v521
    %v523 = vpop.f32.mrf.mxu0
    %524 = vmatprep.mubr.f32.mxu0 0.0
    %525 = vmatmul.mubr.f32.gmra.mxu0 %v446
    %v526 = vpop.f32.mrf.mxu0
    %v527 = vadd.f32 0.0, %v526
    %v528 = vpop.f32.mrf.mxu0
    %529 = vmatprep.mubr.f32.mxu0 0.0
    %530 = vmatmul.mubr.f32.gmra.mxu0 %v448
    %v531 = vpop.f32.mrf.mxu0
    %v532 = vadd.f32 0.0, %v531
    %v533 = vpop.f32.mrf.mxu0
    %534 = vdwg.mxu0
    %v535 = vadd.f32 %v422, %v517
    %v536 = vadd.f32 %v423, %v522
    %v537 = vadd.f32 %v424, %v527
    %v538 = vadd.f32 %v425, %v532
    %vm539 = vcmask 1043456
    %v540 = vrot.slane %v95, 4
    %v541 = vrot.slane %v96, 4
    %v542 = vsel %vm539, %v540, %v541
    %v543 = vrot.slane %v97, 4
    %v544 = vsel %vm539, %v541, %v543
    %v545 = vrot.slane %v98, 4
    %v546 = vrot.slane %v99, 4
    %v547 = vsel %vm539, %v545, %v546
    %v548 = vrot.slane %v100, 4
    %v549 = vsel %vm539, %v546, %v548
    %s550 = scalar_lea.vmem [#allocation6], 128
    %v551 = vld [vmem:[%s550] sm:$0xff]
    %v552 = vld [vmem:[%s550 + $0x8] sm:$0xff]
    %v553 = vld [vmem:[%s550 + $0x10] sm:$0xff]
    %v554 = vld [vmem:[%s550 + $0x18] sm:$0xff]
    %v555 = vsel %vm79, %v542, 0
    %v557 = vsel %vm79, %v544, 0
    %v559 = vsel %vm79, %v547, 0
    %v561 = vsel %vm79, %v549, 0
    %563 = vmatprep.subr.mxu0 0.0
    %564 = vmatpush1.msra.mxu0 0.0
    %565 = vmatprep.subr.mxu0 0.0
    %566 = vmatpush1.msra.mxu0 0.0
    %567 = vmatprep.subr.mxu0 0.0
    %568 = vmatpush1.msra.mxu0 0.0
    %569 = vmatprep.subr.mxu0 0.0
    %570 = vmatpush1.msra.mxu0 0.0
    %571 = vmatprep.subr.mxu0 0.0
    %572 = vmatpush1.msra.mxu0 0.0
    %573 = vmatprep.subr.mxu0 0.0
    %574 = vmatpush1.msra.mxu0 0.0
    %575 = vmatprep.subr.mxu0 0.0
    %576 = vmatpush1.msra.mxu0 0.0
    %577 = vmatprep.subr.mxu0 0.0
    %578 = vmatpush1.msra.mxu0 0.0
    %579 = vmatprep.subr.mxu0 0.0
    %580 = vmatpush1.msra.mxu0 0.0
    %581 = vmatprep.subr.mxu0 0.0
    %582 = vmatpush1.msra.mxu0 0.0
    %583 = vmatprep.subr.mxu0 0.0
    %584 = vmatpush1.msra.mxu0 0.0
    %585 = vmatprep.subr.mxu0 0.0
    %586 = vmatpush1.msra.mxu0 0.0
    %587 = vmatprep.subr.mxu0 0.0
    %588 = vmatpush1.msra.mxu0 %v554
    %589 = vmatprep.subr.mxu0 0.0
    %590 = vmatpush1.msra.mxu0 %v553
    %591 = vmatprep.subr.mxu0 0.0
    %592 = vmatpush1.msra.mxu0 %v552
    %593 = vmatprep.subr.mxu0 0.0
    %594 = vmatpush1.msra.mxu0 %v551
    %595 = vmatprep.subr.mxu0 0.0
    %596 = vmatpush2.msra.mxu0 0.0
    %597 = vmatprep.subr.mxu0 0.0
    %598 = vmatpush2.msra.mxu0 0.0
    %599 = vmatprep.subr.mxu0 0.0
    %600 = vmatpush2.msra.mxu0 0.0
    %601 = vmatprep.subr.mxu0 0.0
    %602 = vmatpush2.msra.mxu0 0.0
    %603 = vmatprep.subr.mxu0 0.0
    %604 = vmatpush2.msra.mxu0 0.0
    %605 = vmatprep.subr.mxu0 0.0
    %606 = vmatpush2.msra.mxu0 0.0
    %607 = vmatprep.subr.mxu0 0.0
    %608 = vmatpush2.msra.mxu0 0.0
    %609 = vmatprep.subr.mxu0 0.0
    %610 = vmatpush2.msra.mxu0 0.0
    %611 = vmatprep.subr.mxu0 0.0
    %612 = vmatpush2.msra.mxu0 0.0
    %613 = vmatprep.subr.mxu0 0.0
    %614 = vmatpush2.msra.mxu0 0.0
    %615 = vmatprep.subr.mxu0 0.0
    %616 = vmatpush2.msra.mxu0 0.0
    %617 = vmatprep.subr.mxu0 0.0
    %618 = vmatpush2.msra.mxu0 0.0
    %619 = vmatprep.subr.mxu0 0.0
    %620 = vmatpush2.msra.mxu0 0.0
    %621 = vmatprep.subr.mxu0 0.0
    %622 = vmatpush2.msra.mxu0 0.0
    %623 = vmatprep.subr.mxu0 0.0
    %624 = vmatpush2.msra.mxu0 0.0
    %625 = vmatprep.subr.mxu0 0.0
    %626 = vmatpush2.msra.mxu0 0.0
    %627 = vmatprep.mubr.f32.mxu0 0.0
    %628 = vmatmul.mubr.f32.gmra.mxu0 %v555
    %v629 = vpop.f32.mrf.mxu0
    %v630 = vadd.f32 0.0, %v629
    %v631 = vpop.f32.mrf.mxu0
    %632 = vmatprep.mubr.f32.mxu0 0.0
    %633 = vmatmul.mubr.f32.gmra.mxu0 %v557
    %v634 = vpop.f32.mrf.mxu0
    %v635 = vadd.f32 0.0, %v634
    %v636 = vpop.f32.mrf.mxu0
    %637 = vmatprep.mubr.f32.mxu0 0.0
    %638 = vmatmul.mubr.f32.gmra.mxu0 %v559
    %v639 = vpop.f32.mrf.mxu0
    %v640 = vadd.f32 0.0, %v639
    %v641 = vpop.f32.mrf.mxu0
    %642 = vmatprep.mubr.f32.mxu0 0.0
    %643 = vmatmul.mubr.f32.gmra.mxu0 %v561
    %v644 = vpop.f32.mrf.mxu0
    %v645 = vadd.f32 0.0, %v644
    %v646 = vpop.f32.mrf.mxu0
    %647 = vdwg.mxu0
    %v648 = vadd.f32 %v535, %v630
    %v649 = vadd.f32 %v536, %v635
    %v650 = vadd.f32 %v537, %v640
    %v651 = vadd.f32 %v538, %v645
    %v652 = vld [vmem:[%s2] sm:$0x1]
    %v654 = vlaneseq
    %v655 = vshrl.u32 %v654, 7
    %v656 = vsub.s32 0, %v655
    %v657 = vrot.slane %v652, %v656
    %v659 = vmul.f32 %v648, %v657
    %v660 = vmul.f32 %v649, %v657
    %v661 = vmul.f32 %v650, %v657
    %v662 = vmul.f32 %v651, %v657
    %v663 = vld [vmem:[#allocation8] sm:$0x1]
    %v665 = vlaneseq
    %v666 = vshrl.u32 %v665, 7
    %v667 = vsub.s32 0, %v666
    %v668 = vrot.slane %v663, %v667
    %v670 = vadd.f32 %v659, %v668
    %v671 = vadd.f32 %v660, %v668
    %v672 = vadd.f32 %v661, %v668
    %v673 = vadd.f32 %v662, %v668
    %v674 = vmax.f32 %v670, 0.0
    %v675 = vmax.f32 %v671, 0.0
    %v676 = vmax.f32 %v672, 0.0
    %v677 = vmax.f32 %v673, 0.0
    %678 = vst.msk [vmem:[#allocation2 + $0x2] sm:$0xff] %vm79, %v674
    %679 = vst.msk [vmem:[#allocation2 + $0xa] sm:$0xff] %vm79, %v675
    %680 = vst.msk [vmem:[#allocation2 + $0x1a] sm:$0xff] %vm79, %v676
    %681 = vst.msk [vmem:[#allocation2 + $0x22] sm:$0xff] %vm79, %v677
    %v682 = vld [vmem:[#allocation2] sm:$0xff]
    %v683 = vld [vmem:[#allocation2 + $0x8] sm:$0xff]
    %v684 = vld [vmem:[#allocation2 + $0x10] sm:$0xf]
    %v685 = vld [vmem:[#allocation2 + $0x18] sm:$0xff]
    %v686 = vld [vmem:[#allocation2 + $0x20] sm:$0xff]
    %v687 = vld [vmem:[#allocation2 + $0x28] sm:$0xf]
    %s688 = scalar_lea.vmem [#allocation6], 160
    %v689 = vld [vmem:[%s688] sm:$0xff]
    %v690 = vld [vmem:[%s688 + $0x8] sm:$0xff]
    %v691 = vld [vmem:[%s688 + $0x10] sm:$0xff]
    %v692 = vld [vmem:[%s688 + $0x18] sm:$0xff]
    %v699 = vrot.slane %v682, 1
    %v700 = vrot.slane %v683, 1
    %v701 = vsel %vm111, %v699, %v700
    %v702 = vrot.slane %v684, 1
    %v703 = vsel %vm111, %v700, %v702
    %v704 = vrot.slane %v685, 1
    %v705 = vrot.slane %v686, 1
    %v706 = vsel %vm111, %v704, %v705
    %v707 = vrot.slane %v687, 1
    %v708 = vsel %vm111, %v705, %v707
    %s709 = scalar_lea.vmem [#allocation6], 192
    %v710 = vld [vmem:[%s709] sm:$0xff]
    %v711 = vld [vmem:[%s709 + $0x8] sm:$0xff]
    %v712 = vld [vmem:[%s709 + $0x10] sm:$0xff]
    %v713 = vld [vmem:[%s709 + $0x18] sm:$0xff]
    %v714 = vsel %vm79, %v701, 0
    %v716 = vsel %vm79, %v703, 0
    %v718 = vsel %vm79, %v706, 0
    %v720 = vsel %vm79, %v708, 0
    %722 = vmatprep.subr.mxu0 0.0
    %723 = vmatpush1.msra.mxu0 0.0
    %724 = vmatprep.subr.mxu0 0.0
    %725 = vmatpush1.msra.mxu0 0.0
    %726 = vmatprep.subr.mxu0 0.0
    %727 = vmatpush1.msra.mxu0 0.0
    %728 = vmatprep.subr.mxu0 0.0
    %729 = vmatpush1.msra.mxu0 0.0
    %730 = vmatprep.subr.mxu0 0.0
    %731 = vmatpush1.msra.mxu0 0.0
    %732 = vmatprep.subr.mxu0 0.0
    %733 = vmatpush1.msra.mxu0 0.0
    %734 = vmatprep.subr.mxu0 0.0
    %735 = vmatpush1.msra.mxu0 0.0
    %736 = vmatprep.subr.mxu0 0.0
    %737 = vmatpush1.msra.mxu0 0.0
    %738 = vmatprep.subr.mxu0 0.0
    %739 = vmatpush1.msra.mxu0 0.0
    %740 = vmatprep.subr.mxu0 0.0
    %741 = vmatpush1.msra.mxu0 0.0
    %742 = vmatprep.subr.mxu0 0.0
    %743 = vmatpush1.msra.mxu0 0.0
    %744 = vmatprep.subr.mxu0 0.0
    %745 = vmatpush1.msra.mxu0 0.0
    %746 = vmatprep.subr.mxu0 0.0
    %747 = vmatpush1.msra.mxu0 %v713
    %748 = vmatprep.subr.mxu0 0.0
    %749 = vmatpush1.msra.mxu0 %v712
    %750 = vmatprep.subr.mxu0 0.0
    %751 = vmatpush1.msra.mxu0 %v711
    %752 = vmatprep.subr.mxu0 0.0
    %753 = vmatpush1.msra.mxu0 %v710
    %754 = vmatprep.subr.mxu0 0.0
    %755 = vmatpush2.msra.mxu0 0.0
    %756 = vmatprep.subr.mxu0 0.0
    %757 = vmatpush2.msra.mxu0 0.0
    %758 = vmatprep.subr.mxu0 0.0
    %759 = vmatpush2.msra.mxu0 0.0
    %760 = vmatprep.subr.mxu0 0.0
    %761 = vmatpush2.msra.mxu0 0.0
    %762 = vmatprep.subr.mxu0 0.0
    %763 = vmatpush2.msra.mxu0 0.0
    %764 = vmatprep.subr.mxu0 0.0
    %765 = vmatpush2.msra.mxu0 0.0
    %766 = vmatprep.subr.mxu0 0.0
    %767 = vmatpush2.msra.mxu0 0.0
    %768 = vmatprep.subr.mxu0 0.0
    %769 = vmatpush2.msra.mxu0 0.0
    %770 = vmatprep.subr.mxu0 0.0
    %771 = vmatpush2.msra.mxu0 0.0
    %772 = vmatprep.subr.mxu0 0.0
    %773 = vmatpush2.msra.mxu0 0.0
    %774 = vmatprep.subr.mxu0 0.0
    %775 = vmatpush2.msra.mxu0 0.0
    %776 = vmatprep.subr.mxu0 0.0
    %777 = vmatpush2.msra.mxu0 0.0
    %778 = vmatprep.subr.mxu0 0.0
    %779 = vmatpush2.msra.mxu0 0.0
    %780 = vmatprep.subr.mxu0 0.0
    %781 = vmatpush2.msra.mxu0 0.0
    %782 = vmatprep.subr.mxu0 0.0
    %783 = vmatpush2.msra.mxu0 0.0
    %784 = vmatprep.subr.mxu0 0.0
    %785 = vmatpush2.msra.mxu0 0.0
    %786 = vmatprep.mubr.f32.mxu0 0.0
    %787 = vmatmul.mubr.f32.gmra.mxu0 %v714
    %v788 = vpop.f32.mrf.mxu0
    %v789 = vadd.f32 0.0, %v788
    %v790 = vpop.f32.mrf.mxu0
    %791 = vmatprep.mubr.f32.mxu0 0.0
    %792 = vmatmul.mubr.f32.gmra.mxu0 %v716
    %v793 = vpop.f32.mrf.mxu0
    %v794 = vadd.f32 0.0, %v793
    %v795 = vpop.f32.mrf.mxu0
    %796 = vmatprep.mubr.f32.mxu0 0.0
    %797 = vmatmul.mubr.f32.gmra.mxu0 %v718
    %v798 = vpop.f32.mrf.mxu0
    %v799 = vadd.f32 0.0, %v798
    %v800 = vpop.f32.mrf.mxu0
    %801 = vmatprep.mubr.f32.mxu0 0.0
    %802 = vmatmul.mubr.f32.gmra.mxu0 %v720
    %v803 = vpop.f32.mrf.mxu0
    %v804 = vadd.f32 0.0, %v803
    %v805 = vpop.f32.mrf.mxu0
    %806 = vdwg.mxu0
    %v807 = vsel %vm79, %v682, 0
    %v809 = vsel %vm79, %v683, 0
    %v811 = vsel %vm79, %v685, 0
    %v813 = vsel %vm79, %v686, 0
    %815 = vmatprep.subr.mxu0 0.0
    %816 = vmatpush1.msra.mxu0 0.0
    %817 = vmatprep.subr.mxu0 0.0
    %818 = vmatpush1.msra.mxu0 0.0
    %819 = vmatprep.subr.mxu0 0.0
    %820 = vmatpush1.msra.mxu0 0.0
    %821 = vmatprep.subr.mxu0 0.0
    %822 = vmatpush1.msra.mxu0 0.0
    %823 = vmatprep.subr.mxu0 0.0
    %824 = vmatpush1.msra.mxu0 0.0
    %825 = vmatprep.subr.mxu0 0.0
    %826 = vmatpush1.msra.mxu0 0.0
    %827 = vmatprep.subr.mxu0 0.0
    %828 = vmatpush1.msra.mxu0 0.0
    %829 = vmatprep.subr.mxu0 0.0
    %830 = vmatpush1.msra.mxu0 0.0
    %831 = vmatprep.subr.mxu0 0.0
    %832 = vmatpush1.msra.mxu0 0.0
    %833 = vmatprep.subr.mxu0 0.0
    %834 = vmatpush1.msra.mxu0 0.0
    %835 = vmatprep.subr.mxu0 0.0
    %836 = vmatpush1.msra.mxu0 0.0
    %837 = vmatprep.subr.mxu0 0.0
    %838 = vmatpush1.msra.mxu0 0.0
    %839 = vmatprep.subr.mxu0 0.0
    %840 = vmatpush1.msra.mxu0 %v692
    %841 = vmatprep.subr.mxu0 0.0
    %842 = vmatpush1.msra.mxu0 %v691
    %843 = vmatprep.subr.mxu0 0.0
    %844 = vmatpush1.msra.mxu0 %v690
    %845 = vmatprep.subr.mxu0 0.0
    %846 = vmatpush1.msra.mxu0 %v689
    %847 = vmatprep.subr.mxu0 0.0
    %848 = vmatpush2.msra.mxu0 0.0
    %849 = vmatprep.subr.mxu0 0.0
    %850 = vmatpush2.msra.mxu0 0.0
    %851 = vmatprep.subr.mxu0 0.0
    %852 = vmatpush2.msra.mxu0 0.0
    %853 = vmatprep.subr.mxu0 0.0
    %854 = vmatpush2.msra.mxu0 0.0
    %855 = vmatprep.subr.mxu0 0.0
    %856 = vmatpush2.msra.mxu0 0.0
    %857 = vmatprep.subr.mxu0 0.0
    %858 = vmatpush2.msra.mxu0 0.0
    %859 = vmatprep.subr.mxu0 0.0
    %860 = vmatpush2.msra.mxu0 0.0
    %861 = vmatprep.subr.mxu0 0.0
    %862 = vmatpush2.msra.mxu0 0.0
    %863 = vmatprep.subr.mxu0 0.0
    %864 = vmatpush2.msra.mxu0 0.0
    %865 = vmatprep.subr.mxu0 0.0
    %866 = vmatpush2.msra.mxu0 0.0
    %867 = vmatprep.subr.mxu0 0.0
    %868 = vmatpush2.msra.mxu0 0.0
    %869 = vmatprep.subr.mxu0 0.0
    %870 = vmatpush2.msra.mxu0 0.0
    %871 = vmatprep.subr.mxu0 0.0
    %872 = vmatpush2.msra.mxu0 0.0
    %873 = vmatprep.subr.mxu0 0.0
    %874 = vmatpush2.msra.mxu0 0.0
    %875 = vmatprep.subr.mxu0 0.0
    %876 = vmatpush2.msra.mxu0 0.0
    %877 = vmatprep.subr.mxu0 0.0
    %878 = vmatpush2.msra.mxu0 0.0
    %879 = vmatprep.mubr.f32.mxu0 0.0
    %880 = vmatmul.mubr.f32.gmra.mxu0 %v807
    %v881 = vpop.f32.mrf.mxu0
    %v882 = vadd.f32 %v789, %v881
    %v883 = vpop.f32.mrf.mxu0
    %884 = vmatprep.mubr.f32.mxu0 0.0
    %885 = vmatmul.mubr.f32.gmra.mxu0 %v809
    %v886 = vpop.f32.mrf.mxu0
    %v887 = vadd.f32 %v794, %v886
    %v888 = vpop.f32.mrf.mxu0
    %889 = vmatprep.mubr.f32.mxu0 0.0
    %890 = vmatmul.mubr.f32.gmra.mxu0 %v811
    %v891 = vpop.f32.mrf.mxu0
    %v892 = vadd.f32 %v799, %v891
    %v893 = vpop.f32.mrf.mxu0
    %894 = vmatprep.mubr.f32.mxu0 0.0
    %895 = vmatmul.mubr.f32.gmra.mxu0 %v813
    %v896 = vpop.f32.mrf.mxu0
    %v897 = vadd.f32 %v804, %v896
    %v898 = vpop.f32.mrf.mxu0
    %899 = vdwg.mxu0
    %v900 = vrot.slane %v682, 2
    %v901 = vrot.slane %v683, 2
    %v902 = vsel %vm313, %v900, %v901
    %v903 = vrot.slane %v684, 2
    %v904 = vsel %vm313, %v901, %v903
    %v905 = vrot.slane %v685, 2
    %v906 = vrot.slane %v686, 2
    %v907 = vsel %vm313, %v905, %v906
    %v908 = vrot.slane %v687, 2
    %v909 = vsel %vm313, %v906, %v908
    %s910 = scalar_lea.vmem [#allocation6], 224
    %v911 = vld [vmem:[%s910] sm:$0xff]
    %v912 = vld [vmem:[%s910 + $0x8] sm:$0xff]
    %v913 = vld [vmem:[%s910 + $0x10] sm:$0xff]
    %v914 = vld [vmem:[%s910 + $0x18] sm:$0xff]
    %v915 = vsel %vm79, %v902, 0
    %v917 = vsel %vm79, %v904, 0
    %v919 = vsel %vm79, %v907, 0
    %v921 = vsel %vm79, %v909, 0
    %923 = vmatprep.subr.mxu0 0.0
    %924 = vmatpush1.msra.mxu0 0.0
    %925 = vmatprep.subr.mxu0 0.0
    %926 = vmatpush1.msra.mxu0 0.0
    %927 = vmatprep.subr.mxu0 0.0
    %928 = vmatpush1.msra.mxu0 0.0
    %929 = vmatprep.subr.mxu0 0.0
    %930 = vmatpush1.msra.mxu0 0.0
    %931 = vmatprep.subr.mxu0 0.0
    %932 = vmatpush1.msra.mxu0 0.0
    %933 = vmatprep.subr.mxu0 0.0
    %934 = vmatpush1.msra.mxu0 0.0
    %935 = vmatprep.subr.mxu0 0.0
    %936 = vmatpush1.msra.mxu0 0.0
    %937 = vmatprep.subr.mxu0 0.0
    %938 = vmatpush1.msra.mxu0 0.0
    %939 = vmatprep.subr.mxu0 0.0
    %940 = vmatpush1.msra.mxu0 0.0
    %941 = vmatprep.subr.mxu0 0.0
    %942 = vmatpush1.msra.mxu0 0.0
    %943 = vmatprep.subr.mxu0 0.0
    %944 = vmatpush1.msra.mxu0 0.0
    %945 = vmatprep.subr.mxu0 0.0
    %946 = vmatpush1.msra.mxu0 0.0
    %947 = vmatprep.subr.mxu0 0.0
    %948 = vmatpush1.msra.mxu0 %v914
    %949 = vmatprep.subr.mxu0 0.0
    %950 = vmatpush1.msra.mxu0 %v913
    %951 = vmatprep.subr.mxu0 0.0
    %952 = vmatpush1.msra.mxu0 %v912
    %953 = vmatprep.subr.mxu0 0.0
    %954 = vmatpush1.msra.mxu0 %v911
    %955 = vmatprep.subr.mxu0 0.0
    %956 = vmatpush2.msra.mxu0 0.0
    %957 = vmatprep.subr.mxu0 0.0
    %958 = vmatpush2.msra.mxu0 0.0
    %959 = vmatprep.subr.mxu0 0.0
    %960 = vmatpush2.msra.mxu0 0.0
    %961 = vmatprep.subr.mxu0 0.0
    %962 = vmatpush2.msra.mxu0 0.0
    %963 = vmatprep.subr.mxu0 0.0
    %964 = vmatpush2.msra.mxu0 0.0
    %965 = vmatprep.subr.mxu0 0.0
    %966 = vmatpush2.msra.mxu0 0.0
    %967 = vmatprep.subr.mxu0 0.0
    %968 = vmatpush2.msra.mxu0 0.0
    %969 = vmatprep.subr.mxu0 0.0
    %970 = vmatpush2.msra.mxu0 0.0
    %971 = vmatprep.subr.mxu0 0.0
    %972 = vmatpush2.msra.mxu0 0.0
    %973 = vmatprep.subr.mxu0 0.0
    %974 = vmatpush2.msra.mxu0 0.0
    %975 = vmatprep.subr.mxu0 0.0
    %976 = vmatpush2.msra.mxu0 0.0
    %977 = vmatprep.subr.mxu0 0.0
    %978 = vmatpush2.msra.mxu0 0.0
    %979 = vmatprep.subr.mxu0 0.0
    %980 = vmatpush2.msra.mxu0 0.0
    %981 = vmatprep.subr.mxu0 0.0
    %982 = vmatpush2.msra.mxu0 0.0
    %983 = vmatprep.subr.mxu0 0.0
    %984 = vmatpush2.msra.mxu0 0.0
    %985 = vmatprep.subr.mxu0 0.0
    %986 = vmatpush2.msra.mxu0 0.0
    %987 = vmatprep.mubr.f32.mxu0 0.0
    %988 = vmatmul.mubr.f32.gmra.mxu0 %v915
    %v989 = vpop.f32.mrf.mxu0
    %v990 = vadd.f32 0.0, %v989
    %v991 = vpop.f32.mrf.mxu0
    %992 = vmatprep.mubr.f32.mxu0 0.0
    %993 = vmatmul.mubr.f32.gmra.mxu0 %v917
    %v994 = vpop.f32.mrf.mxu0
    %v995 = vadd.f32 0.0, %v994
    %v996 = vpop.f32.mrf.mxu0
    %997 = vmatprep.mubr.f32.mxu0 0.0
    %998 = vmatmul.mubr.f32.gmra.mxu0 %v919
    %v999 = vpop.f32.mrf.mxu0
    %v1000 = vadd.f32 0.0, %v999
    %v1001 = vpop.f32.mrf.mxu0
    %1002 = vmatprep.mubr.f32.mxu0 0.0
    %1003 = vmatmul.mubr.f32.gmra.mxu0 %v921
    %v1004 = vpop.f32.mrf.mxu0
    %v1005 = vadd.f32 0.0, %v1004
    %v1006 = vpop.f32.mrf.mxu0
    %1007 = vdwg.mxu0
    %v1008 = vadd.f32 %v882, %v990
    %v1009 = vadd.f32 %v887, %v995
    %v1010 = vadd.f32 %v892, %v1000
    %v1011 = vadd.f32 %v897, %v1005
    %v1012 = vrot.slane %v682, 3
    %v1013 = vrot.slane %v683, 3
    %v1014 = vsel %vm426, %v1012, %v1013
    %v1015 = vrot.slane %v684, 3
    %v1016 = vsel %vm426, %v1013, %v1015
    %v1017 = vrot.slane %v685, 3
    %v1018 = vrot.slane %v686, 3
    %v1019 = vsel %vm426, %v1017, %v1018
    %v1020 = vrot.slane %v687, 3
    %v1021 = vsel %vm426, %v1018, %v1020
    %s1022 = scalar_lea.vmem [#allocation6], 256
    %v1023 = vld [vmem:[%s1022] sm:$0xff]
    %v1024 = vld [vmem:[%s1022 + $0x8] sm:$0xff]
    %v1025 = vld [vmem:[%s1022 + $0x10] sm:$0xff]
    %v1026 = vld [vmem:[%s1022 + $0x18] sm:$0xff]
    %v1027 = vsel %vm79, %v1014, 0
    %v1029 = vsel %vm79, %v1016, 0
    %v1031 = vsel %vm79, %v1019, 0
    %v1033 = vsel %vm79, %v1021, 0
    %1035 = vmatprep.subr.mxu0 0.0
    %1036 = vmatpush1.msra.mxu0 0.0
    %1037 = vmatprep.subr.mxu0 0.0
    %1038 = vmatpush1.msra.mxu0 0.0
    %1039 = vmatprep.subr.mxu0 0.0
    %1040 = vmatpush1.msra.mxu0 0.0
    %1041 = vmatprep.subr.mxu0 0.0
    %1042 = vmatpush1.msra.mxu0 0.0
    %1043 = vmatprep.subr.mxu0 0.0
    %1044 = vmatpush1.msra.mxu0 0.0
    %1045 = vmatprep.subr.mxu0 0.0
    %1046 = vmatpush1.msra.mxu0 0.0
    %1047 = vmatprep.subr.mxu0 0.0
    %1048 = vmatpush1.msra.mxu0 0.0
    %1049 = vmatprep.subr.mxu0 0.0
    %1050 = vmatpush1.msra.mxu0 0.0
    %1051 = vmatprep.subr.mxu0 0.0
    %1052 = vmatpush1.msra.mxu0 0.0
    %1053 = vmatprep.subr.mxu0 0.0
    %1054 = vmatpush1.msra.mxu0 0.0
    %1055 = vmatprep.subr.mxu0 0.0
    %1056 = vmatpush1.msra.mxu0 0.0
    %1057 = vmatprep.subr.mxu0 0.0
    %1058 = vmatpush1.msra.mxu0 0.0
    %1059 = vmatprep.subr.mxu0 0.0
    %1060 = vmatpush1.msra.mxu0 %v1026
    %1061 = vmatprep.subr.mxu0 0.0
    %1062 = vmatpush1.msra.mxu0 %v1025
    %1063 = vmatprep.subr.mxu0 0.0
    %1064 = vmatpush1.msra.mxu0 %v1024
    %1065 = vmatprep.subr.mxu0 0.0
    %1066 = vmatpush1.msra.mxu0 %v1023
    %1067 = vmatprep.subr.mxu0 0.0
    %1068 = vmatpush2.msra.mxu0 0.0
    %1069 = vmatprep.subr.mxu0 0.0
    %1070 = vmatpush2.msra.mxu0 0.0
    %1071 = vmatprep.subr.mxu0 0.0
    %1072 = vmatpush2.msra.mxu0 0.0
    %1073 = vmatprep.subr.mxu0 0.0
    %1074 = vmatpush2.msra.mxu0 0.0
    %1075 = vmatprep.subr.mxu0 0.0
    %1076 = vmatpush2.msra.mxu0 0.0
    %1077 = vmatprep.subr.mxu0 0.0
    %1078 = vmatpush2.msra.mxu0 0.0
    %1079 = vmatprep.subr.mxu0 0.0
    %1080 = vmatpush2.msra.mxu0 0.0
    %1081 = vmatprep.subr.mxu0 0.0
    %1082 = vmatpush2.msra.mxu0 0.0
    %1083 = vmatprep.subr.mxu0 0.0
    %1084 = vmatpush2.msra.mxu0 0.0
    %1085 = vmatprep.subr.mxu0 0.0
    %1086 = vmatpush2.msra.mxu0 0.0
    %1087 = vmatprep.subr.mxu0 0.0
    %1088 = vmatpush2.msra.mxu0 0.0
    %1089 = vmatprep.subr.mxu0 0.0
    %1090 = vmatpush2.msra.mxu0 0.0
    %1091 = vmatprep.subr.mxu0 0.0
    %1092 = vmatpush2.msra.mxu0 0.0
    %1093 = vmatprep.subr.mxu0 0.0
    %1094 = vmatpush2.msra.mxu0 0.0
    %1095 = vmatprep.subr.mxu0 0.0
    %1096 = vmatpush2.msra.mxu0 0.0
    %1097 = vmatprep.subr.mxu0 0.0
    %1098 = vmatpush2.msra.mxu0 0.0
    %1099 = vmatprep.mubr.f32.mxu0 0.0
    %1100 = vmatmul.mubr.f32.gmra.mxu0 %v1027
    %v1101 = vpop.f32.mrf.mxu0
    %v1102 = vadd.f32 0.0, %v1101
    %v1103 = vpop.f32.mrf.mxu0
    %1104 = vmatprep.mubr.f32.mxu0 0.0
    %1105 = vmatmul.mubr.f32.gmra.mxu0 %v1029
    %v1106 = vpop.f32.mrf.mxu0
    %v1107 = vadd.f32 0.0, %v1106
    %v1108 = vpop.f32.mrf.mxu0
    %1109 = vmatprep.mubr.f32.mxu0 0.0
    %1110 = vmatmul.mubr.f32.gmra.mxu0 %v1031
    %v1111 = vpop.f32.mrf.mxu0
    %v1112 = vadd.f32 0.0, %v1111
    %v1113 = vpop.f32.mrf.mxu0
    %1114 = vmatprep.mubr.f32.mxu0 0.0
    %1115 = vmatmul.mubr.f32.gmra.mxu0 %v1033
    %v1116 = vpop.f32.mrf.mxu0
    %v1117 = vadd.f32 0.0, %v1116
    %v1118 = vpop.f32.mrf.mxu0
    %1119 = vdwg.mxu0
    %v1120 = vadd.f32 %v1008, %v1102
    %v1121 = vadd.f32 %v1009, %v1107
    %v1122 = vadd.f32 %v1010, %v1112
    %v1123 = vadd.f32 %v1011, %v1117
    %v1124 = vrot.slane %v682, 4
    %v1125 = vrot.slane %v683, 4
    %v1126 = vsel %vm539, %v1124, %v1125
    %v1127 = vrot.slane %v684, 4
    %v1128 = vsel %vm539, %v1125, %v1127
    %v1129 = vrot.slane %v685, 4
    %v1130 = vrot.slane %v686, 4
    %v1131 = vsel %vm539, %v1129, %v1130
    %v1132 = vrot.slane %v687, 4
    %v1133 = vsel %vm539, %v1130, %v1132
    %s1134 = scalar_lea.vmem [#allocation6], 288
    %v1135 = vld [vmem:[%s1134] sm:$0xff]
    %v1136 = vld [vmem:[%s1134 + $0x8] sm:$0xff]
    %v1137 = vld [vmem:[%s1134 + $0x10] sm:$0xff]
    %v1138 = vld [vmem:[%s1134 + $0x18] sm:$0xff]
    %v1139 = vsel %vm79, %v1126, 0
    %v1141 = vsel %vm79, %v1128, 0
    %v1143 = vsel %vm79, %v1131, 0
    %v1145 = vsel %vm79, %v1133, 0
    %1147 = vmatprep.subr.mxu0 0.0
    %1148 = vmatpush1.msra.mxu0 0.0
    %1149 = vmatprep.subr.mxu0 0.0
    %1150 = vmatpush1.msra.mxu0 0.0
    %1151 = vmatprep.subr.mxu0 0.0
    %1152 = vmatpush1.msra.mxu0 0.0
    %1153 = vmatprep.subr.mxu0 0.0
    %1154 = vmatpush1.msra.mxu0 0.0
    %1155 = vmatprep.subr.mxu0 0.0
    %1156 = vmatpush1.msra.mxu0 0.0
    %1157 = vmatprep.subr.mxu0 0.0
    %1158 = vmatpush1.msra.mxu0 0.0
    %1159 = vmatprep.subr.mxu0 0.0
    %1160 = vmatpush1.msra.mxu0 0.0
    %1161 = vmatprep.subr.mxu0 0.0
    %1162 = vmatpush1.msra.mxu0 0.0
    %1163 = vmatprep.subr.mxu0 0.0
    %1164 = vmatpush1.msra.mxu0 0.0
    %1165 = vmatprep.subr.mxu0 0.0
    %1166 = vmatpush1.msra.mxu0 0.0
    %1167 = vmatprep.subr.mxu0 0.0
    %1168 = vmatpush1.msra.mxu0 0.0
    %1169 = vmatprep.subr.mxu0 0.0
    %1170 = vmatpush1.msra.mxu0 0.0
    %1171 = vmatprep.subr.mxu0 0.0
    %1172 = vmatpush1.msra.mxu0 %v1138
    %1173 = vmatprep.subr.mxu0 0.0
    %1174 = vmatpush1.msra.mxu0 %v1137
    %1175 = vmatprep.subr.mxu0 0.0
    %1176 = vmatpush1.msra.mxu0 %v1136
    %1177 = vmatprep.subr.mxu0 0.0
    %1178 = vmatpush1.msra.mxu0 %v1135
    %1179 = vmatprep.subr.mxu0 0.0
    %1180 = vmatpush2.msra.mxu0 0.0
    %1181 = vmatprep.subr.mxu0 0.0
    %1182 = vmatpush2.msra.mxu0 0.0
    %1183 = vmatprep.subr.mxu0 0.0
    %1184 = vmatpush2.msra.mxu0 0.0
    %1185 = vmatprep.subr.mxu0 0.0
    %1186 = vmatpush2.msra.mxu0 0.0
    %1187 = vmatprep.subr.mxu0 0.0
    %1188 = vmatpush2.msra.mxu0 0.0
    %1189 = vmatprep.subr.mxu0 0.0
    %1190 = vmatpush2.msra.mxu0 0.0
    %1191 = vmatprep.subr.mxu0 0.0
    %1192 = vmatpush2.msra.mxu0 0.0
    %1193 = vmatprep.subr.mxu0 0.0
    %1194 = vmatpush2.msra.mxu0 0.0
    %1195 = vmatprep.subr.mxu0 0.0
    %1196 = vmatpush2.msra.mxu0 0.0
    %1197 = vmatprep.subr.mxu0 0.0
    %1198 = vmatpush2.msra.mxu0 0.0
    %1199 = vmatprep.subr.mxu0 0.0
    %1200 = vmatpush2.msra.mxu0 0.0
    %1201 = vmatprep.subr.mxu0 0.0
    %1202 = vmatpush2.msra.mxu0 0.0
    %1203 = vmatprep.subr.mxu0 0.0
    %1204 = vmatpush2.msra.mxu0 0.0
    %1205 = vmatprep.subr.mxu0 0.0
    %1206 = vmatpush2.msra.mxu0 0.0
    %1207 = vmatprep.subr.mxu0 0.0
    %1208 = vmatpush2.msra.mxu0 0.0
    %1209 = vmatprep.subr.mxu0 0.0
    %1210 = vmatpush2.msra.mxu0 0.0
    %1211 = vmatprep.mubr.f32.mxu0 0.0
    %1212 = vmatmul.mubr.f32.gmra.mxu0 %v1139
    %v1213 = vpop.f32.mrf.mxu0
    %v1214 = vadd.f32 0.0, %v1213
    %v1215 = vpop.f32.mrf.mxu0
    %1216 = vmatprep.mubr.f32.mxu0 0.0
    %1217 = vmatmul.mubr.f32.gmra.mxu0 %v1141
    %v1218 = vpop.f32.mrf.mxu0
    %v1219 = vadd.f32 0.0, %v1218
    %v1220 = vpop.f32.mrf.mxu0
    %1221 = vmatprep.mubr.f32.mxu0 0.0
    %1222 = vmatmul.mubr.f32.gmra.mxu0 %v1143
    %v1223 = vpop.f32.mrf.mxu0
    %v1224 = vadd.f32 0.0, %v1223
    %v1225 = vpop.f32.mrf.mxu0
    %1226 = vmatprep.mubr.f32.mxu0 0.0
    %1227 = vmatmul.mubr.f32.gmra.mxu0 %v1145
    %v1228 = vpop.f32.mrf.mxu0
    %v1229 = vadd.f32 0.0, %v1228
    %v1230 = vpop.f32.mrf.mxu0
    %1231 = vdwg.mxu0
    %v1232 = vadd.f32 %v1120, %v1214
    %v1233 = vadd.f32 %v1121, %v1219
    %v1234 = vadd.f32 %v1122, %v1224
    %v1235 = vadd.f32 %v1123, %v1229
    %s1236 = scalar_lea.vmem %s2, 1
    %v1237 = vld [vmem:[%s1236] sm:$0x1]
    %v1239 = vlaneseq
    %v1240 = vshrl.u32 %v1239, 7
    %v1241 = vsub.s32 0, %v1240
    %v1242 = vrot.slane %v1237, %v1241
    %v1244 = vmul.f32 %v1232, %v1242
    %v1245 = vmul.f32 %v1233, %v1242
    %v1246 = vmul.f32 %v1234, %v1242
    %v1247 = vmul.f32 %v1235, %v1242
    %s1248 = scalar_lea.vmem [#allocation8], 1
    %v1249 = vld [vmem:[%s1248] sm:$0x1]
    %v1251 = vlaneseq
    %v1252 = vshrl.u32 %v1251, 7
    %v1253 = vsub.s32 0, %v1252
    %v1254 = vrot.slane %v1249, %v1253
    %v1256 = vadd.f32 %v1244, %v1254
    %v1257 = vadd.f32 %v1245, %v1254
    %v1258 = vadd.f32 %v1246, %v1254
    %v1259 = vadd.f32 %v1247, %v1254
    %v1260 = vmax.f32 %v1256, 0.0
    %v1261 = vmax.f32 %v1257, 0.0
    %v1262 = vmax.f32 %v1258, 0.0
    %v1263 = vmax.f32 %v1259, 0.0
    %1264 = vst.msk [vmem:[#allocation2 + $0x2] sm:$0xff] %vm79, %v1260
    %1265 = vst.msk [vmem:[#allocation2 + $0xa] sm:$0xff] %vm79, %v1261
    %1266 = vst.msk [vmem:[#allocation2 + $0x1a] sm:$0xff] %vm79, %v1262
    %1267 = vst.msk [vmem:[#allocation2 + $0x22] sm:$0xff] %vm79, %v1263
    %v1268 = vld [vmem:[#allocation2] sm:$0xff]
    %v1269 = vld [vmem:[#allocation2 + $0x8] sm:$0xff]
    %v1270 = vld [vmem:[#allocation2 + $0x10] sm:$0xf]
    %v1271 = vld [vmem:[#allocation2 + $0x18] sm:$0xff]
    %v1272 = vld [vmem:[#allocation2 + $0x20] sm:$0xff]
    %v1273 = vld [vmem:[#allocation2 + $0x28] sm:$0xf]
    %s1274 = scalar_lea.vmem [#allocation6], 320
    %v1275 = vld [vmem:[%s1274] sm:$0xff]
    %v1276 = vld [vmem:[%s1274 + $0x8] sm:$0xff]
    %v1277 = vld [vmem:[%s1274 + $0x10] sm:$0xff]
    %v1278 = vld [vmem:[%s1274 + $0x18] sm:$0xff]
    %v1285 = vrot.slane %v1268, 1
    %v1286 = vrot.slane %v1269, 1
    %v1287 = vsel %vm111, %v1285, %v1286
    %v1288 = vrot.slane %v1270, 1
    %v1289 = vsel %vm111, %v1286, %v1288
    %v1290 = vrot.slane %v1271, 1
    %v1291 = vrot.slane %v1272, 1
    %v1292 = vsel %vm111, %v1290, %v1291
    %v1293 = vrot.slane %v1273, 1
    %v1294 = vsel %vm111, %v1291, %v1293
    %s1295 = scalar_lea.vmem [#allocation6], 352
    %v1296 = vld [vmem:[%s1295] sm:$0xff]
    %v1297 = vld [vmem:[%s1295 + $0x8] sm:$0xff]
    %v1298 = vld [vmem:[%s1295 + $0x10] sm:$0xff]
    %v1299 = vld [vmem:[%s1295 + $0x18] sm:$0xff]
    %v1300 = vsel %vm79, %v1287, 0
    %v1302 = vsel %vm79, %v1289, 0
    %v1304 = vsel %vm79, %v1292, 0
    %v1306 = vsel %vm79, %v1294, 0
    %1308 = vmatprep.subr.mxu0 0.0
    %1309 = vmatpush1.msra.mxu0 0.0
    %1310 = vmatprep.subr.mxu0 0.0
    %1311 = vmatpush1.msra.mxu0 0.0
    %1312 = vmatprep.subr.mxu0 0.0
    %1313 = vmatpush1.msra.mxu0 0.0
    %1314 = vmatprep.subr.mxu0 0.0
    %1315 = vmatpush1.msra.mxu0 0.0
    %1316 = vmatprep.subr.mxu0 0.0
    %1317 = vmatpush1.msra.mxu0 0.0
    %1318 = vmatprep.subr.mxu0 0.0
    %1319 = vmatpush1.msra.mxu0 0.0
    %1320 = vmatprep.subr.mxu0 0.0
    %1321 = vmatpush1.msra.mxu0 0.0
    %1322 = vmatprep.subr.mxu0 0.0
    %1323 = vmatpush1.msra.mxu0 0.0
    %1324 = vmatprep.subr.mxu0 0.0
    %1325 = vmatpush1.msra.mxu0 0.0
    %1326 = vmatprep.subr.mxu0 0.0
    %1327 = vmatpush1.msra.mxu0 0.0
    %1328 = vmatprep.subr.mxu0 0.0
    %1329 = vmatpush1.msra.mxu0 0.0
    %1330 = vmatprep.subr.mxu0 0.0
    %1331 = vmatpush1.msra.mxu0 0.0
    %1332 = vmatprep.subr.mxu0 0.0
    %1333 = vmatpush1.msra.mxu0 %v1299
    %1334 = vmatprep.subr.mxu0 0.0
    %1335 = vmatpush1.msra.mxu0 %v1298
    %1336 = vmatprep.subr.mxu0 0.0
    %1337 = vmatpush1.msra.mxu0 %v1297
    %1338 = vmatprep.subr.mxu0 0.0
    %1339 = vmatpush1.msra.mxu0 %v1296
    %1340 = vmatprep.subr.mxu0 0.0
    %1341 = vmatpush2.msra.mxu0 0.0
    %1342 = vmatprep.subr.mxu0 0.0
    %1343 = vmatpush2.msra.mxu0 0.0
    %1344 = vmatprep.subr.mxu0 0.0
    %1345 = vmatpush2.msra.mxu0 0.0
    %1346 = vmatprep.subr.mxu0 0.0
    %1347 = vmatpush2.msra.mxu0 0.0
    %1348 = vmatprep.subr.mxu0 0.0
    %1349 = vmatpush2.msra.mxu0 0.0
    %1350 = vmatprep.subr.mxu0 0.0
    %1351 = vmatpush2.msra.mxu0 0.0
    %1352 = vmatprep.subr.mxu0 0.0
    %1353 = vmatpush2.msra.mxu0 0.0
    %1354 = vmatprep.subr.mxu0 0.0
    %1355 = vmatpush2.msra.mxu0 0.0
    %1356 = vmatprep.subr.mxu0 0.0
    %1357 = vmatpush2.msra.mxu0 0.0
    %1358 = vmatprep.subr.mxu0 0.0
    %1359 = vmatpush2.msra.mxu0 0.0
    %1360 = vmatprep.subr.mxu0 0.0
    %1361 = vmatpush2.msra.mxu0 0.0
    %1362 = vmatprep.subr.mxu0 0.0
    %1363 = vmatpush2.msra.mxu0 0.0
    %1364 = vmatprep.subr.mxu0 0.0
    %1365 = vmatpush2.msra.mxu0 0.0
    %1366 = vmatprep.subr.mxu0 0.0
    %1367 = vmatpush2.msra.mxu0 0.0
    %1368 = vmatprep.subr.mxu0 0.0
    %1369 = vmatpush2.msra.mxu0 0.0
    %1370 = vmatprep.subr.mxu0 0.0
    %1371 = vmatpush2.msra.mxu0 0.0
    %1372 = vmatprep.mubr.f32.mxu0 0.0
    %1373 = vmatmul.mubr.f32.gmra.mxu0 %v1300
    %v1374 = vpop.f32.mrf.mxu0
    %v1375 = vadd.f32 0.0, %v1374
    %v1376 = vpop.f32.mrf.mxu0
    %1377 = vmatprep.mubr.f32.mxu0 0.0
    %1378 = vmatmul.mubr.f32.gmra.mxu0 %v1302
    %v1379 = vpop.f32.mrf.mxu0
    %v1380 = vadd.f32 0.0, %v1379
    %v1381 = vpop.f32.mrf.mxu0
    %1382 = vmatprep.mubr.f32.mxu0 0.0
    %1383 = vmatmul.mubr.f32.gmra.mxu0 %v1304
    %v1384 = vpop.f32.mrf.mxu0
    %v1385 = vadd.f32 0.0, %v1384
    %v1386 = vpop.f32.mrf.mxu0
    %1387 = vmatprep.mubr.f32.mxu0 0.0
    %1388 = vmatmul.mubr.f32.gmra.mxu0 %v1306
    %v1389 = vpop.f32.mrf.mxu0
    %v1390 = vadd.f32 0.0, %v1389
    %v1391 = vpop.f32.mrf.mxu0
    %1392 = vdwg.mxu0
    %v1393 = vsel %vm79, %v1268, 0
    %v1395 = vsel %vm79, %v1269, 0
    %v1397 = vsel %vm79, %v1271, 0
    %v1399 = vsel %vm79, %v1272, 0
    %1401 = vmatprep.subr.mxu0 0.0
    %1402 = vmatpush1.msra.mxu0 0.0
    %1403 = vmatprep.subr.mxu0 0.0
    %1404 = vmatpush1.msra.mxu0 0.0
    %1405 = vmatprep.subr.mxu0 0.0
    %1406 = vmatpush1.msra.mxu0 0.0
    %1407 = vmatprep.subr.mxu0 0.0
    %1408 = vmatpush1.msra.mxu0 0.0
    %1409 = vmatprep.subr.mxu0 0.0
    %1410 = vmatpush1.msra.mxu0 0.0
    %1411 = vmatprep.subr.mxu0 0.0
    %1412 = vmatpush1.msra.mxu0 0.0
    %1413 = vmatprep.subr.mxu0 0.0
    %1414 = vmatpush1.msra.mxu0 0.0
    %1415 = vmatprep.subr.mxu0 0.0
    %1416 = vmatpush1.msra.mxu0 0.0
    %1417 = vmatprep.subr.mxu0 0.0
    %1418 = vmatpush1.msra.mxu0 0.0
    %1419 = vmatprep.subr.mxu0 0.0
    %1420 = vmatpush1.msra.mxu0 0.0
    %1421 = vmatprep.subr.mxu0 0.0
    %1422 = vmatpush1.msra.mxu0 0.0
    %1423 = vmatprep.subr.mxu0 0.0
    %1424 = vmatpush1.msra.mxu0 0.0
    %1425 = vmatprep.subr.mxu0 0.0
    %1426 = vmatpush1.msra.mxu0 %v1278
    %1427 = vmatprep.subr.mxu0 0.0
    %1428 = vmatpush1.msra.mxu0 %v1277
    %1429 = vmatprep.subr.mxu0 0.0
    %1430 = vmatpush1.msra.mxu0 %v1276
    %1431 = vmatprep.subr.mxu0 0.0
    %1432 = vmatpush1.msra.mxu0 %v1275
    %1433 = vmatprep.subr.mxu0 0.0
    %1434 = vmatpush2.msra.mxu0 0.0
    %1435 = vmatprep.subr.mxu0 0.0
    %1436 = vmatpush2.msra.mxu0 0.0
    %1437 = vmatprep.subr.mxu0 0.0
    %1438 = vmatpush2.msra.mxu0 0.0
    %1439 = vmatprep.subr.mxu0 0.0
    %1440 = vmatpush2.msra.mxu0 0.0
    %1441 = vmatprep.subr.mxu0 0.0
    %1442 = vmatpush2.msra.mxu0 0.0
    %1443 = vmatprep.subr.mxu0 0.0
    %1444 = vmatpush2.msra.mxu0 0.0
    %1445 = vmatprep.subr.mxu0 0.0
    %1446 = vmatpush2.msra.mxu0 0.0
    %1447 = vmatprep.subr.mxu0 0.0
    %1448 = vmatpush2.msra.mxu0 0.0
    %1449 = vmatprep.subr.mxu0 0.0
    %1450 = vmatpush2.msra.mxu0 0.0
    %1451 = vmatprep.subr.mxu0 0.0
    %1452 = vmatpush2.msra.mxu0 0.0
    %1453 = vmatprep.subr.mxu0 0.0
    %1454 = vmatpush2.msra.mxu0 0.0
    %1455 = vmatprep.subr.mxu0 0.0
    %1456 = vmatpush2.msra.mxu0 0.0
    %1457 = vmatprep.subr.mxu0 0.0
    %1458 = vmatpush2.msra.mxu0 0.0
    %1459 = vmatprep.subr.mxu0 0.0
    %1460 = vmatpush2.msra.mxu0 0.0
    %1461 = vmatprep.subr.mxu0 0.0
    %1462 = vmatpush2.msra.mxu0 0.0
    %1463 = vmatprep.subr.mxu0 0.0
    %1464 = vmatpush2.msra.mxu0 0.0
    %1465 = vmatprep.mubr.f32.mxu0 0.0
    %1466 = vmatmul.mubr.f32.gmra.mxu0 %v1393
    %v1467 = vpop.f32.mrf.mxu0
    %v1468 = vadd.f32 %v1375, %v1467
    %v1469 = vpop.f32.mrf.mxu0
    %1470 = vmatprep.mubr.f32.mxu0 0.0
    %1471 = vmatmul.mubr.f32.gmra.mxu0 %v1395
    %v1472 = vpop.f32.mrf.mxu0
    %v1473 = vadd.f32 %v1380, %v1472
    %v1474 = vpop.f32.mrf.mxu0
    %1475 = vmatprep.mubr.f32.mxu0 0.0
    %1476 = vmatmul.mubr.f32.gmra.mxu0 %v1397
    %v1477 = vpop.f32.mrf.mxu0
    %v1478 = vadd.f32 %v1385, %v1477
    %v1479 = vpop.f32.mrf.mxu0
    %1480 = vmatprep.mubr.f32.mxu0 0.0
    %1481 = vmatmul.mubr.f32.gmra.mxu0 %v1399
    %v1482 = vpop.f32.mrf.mxu0
    %v1483 = vadd.f32 %v1390, %v1482
    %v1484 = vpop.f32.mrf.mxu0
    %1485 = vdwg.mxu0
    %v1486 = vrot.slane %v1268, 2
    %v1487 = vrot.slane %v1269, 2
    %v1488 = vsel %vm313, %v1486, %v1487
    %v1489 = vrot.slane %v1270, 2
    %v1490 = vsel %vm313, %v1487, %v1489
    %v1491 = vrot.slane %v1271, 2
    %v1492 = vrot.slane %v1272, 2
    %v1493 = vsel %vm313, %v1491, %v1492
    %v1494 = vrot.slane %v1273, 2
    %v1495 = vsel %vm313, %v1492, %v1494
    %s1496 = scalar_lea.vmem [#allocation6], 384
    %v1497 = vld [vmem:[%s1496] sm:$0xff]
    %v1498 = vld [vmem:[%s1496 + $0x8] sm:$0xff]
    %v1499 = vld [vmem:[%s1496 + $0x10] sm:$0xff]
    %v1500 = vld [vmem:[%s1496 + $0x18] sm:$0xff]
    %v1501 = vsel %vm79, %v1488, 0
    %v1503 = vsel %vm79, %v1490, 0
    %v1505 = vsel %vm79, %v1493, 0
    %v1507 = vsel %vm79, %v1495, 0
    %1509 = vmatprep.subr.mxu0 0.0
    %1510 = vmatpush1.msra.mxu0 0.0
    %1511 = vmatprep.subr.mxu0 0.0
    %1512 = vmatpush1.msra.mxu0 0.0
    %1513 = vmatprep.subr.mxu0 0.0
    %1514 = vmatpush1.msra.mxu0 0.0
    %1515 = vmatprep.subr.mxu0 0.0
    %1516 = vmatpush1.msra.mxu0 0.0
    %1517 = vmatprep.subr.mxu0 0.0
    %1518 = vmatpush1.msra.mxu0 0.0
    %1519 = vmatprep.subr.mxu0 0.0
    %1520 = vmatpush1.msra.mxu0 0.0
    %1521 = vmatprep.subr.mxu0 0.0
    %1522 = vmatpush1.msra.mxu0 0.0
    %1523 = vmatprep.subr.mxu0 0.0
    %1524 = vmatpush1.msra.mxu0 0.0
    %1525 = vmatprep.subr.mxu0 0.0
    %1526 = vmatpush1.msra.mxu0 0.0
    %1527 = vmatprep.subr.mxu0 0.0
    %1528 = vmatpush1.msra.mxu0 0.0
    %1529 = vmatprep.subr.mxu0 0.0
    %1530 = vmatpush1.msra.mxu0 0.0
    %1531 = vmatprep.subr.mxu0 0.0
    %1532 = vmatpush1.msra.mxu0 0.0
    %1533 = vmatprep.subr.mxu0 0.0
    %1534 = vmatpush1.msra.mxu0 %v1500
    %1535 = vmatprep.subr.mxu0 0.0
    %1536 = vmatpush1.msra.mxu0 %v1499
    %1537 = vmatprep.subr.mxu0 0.0
    %1538 = vmatpush1.msra.mxu0 %v1498
    %1539 = vmatprep.subr.mxu0 0.0
    %1540 = vmatpush1.msra.mxu0 %v1497
    %1541 = vmatprep.subr.mxu0 0.0
    %1542 = vmatpush2.msra.mxu0 0.0
    %1543 = vmatprep.subr.mxu0 0.0
    %1544 = vmatpush2.msra.mxu0 0.0
    %1545 = vmatprep.subr.mxu0 0.0
    %1546 = vmatpush2.msra.mxu0 0.0
    %1547 = vmatprep.subr.mxu0 0.0
    %1548 = vmatpush2.msra.mxu0 0.0
    %1549 = vmatprep.subr.mxu0 0.0
    %1550 = vmatpush2.msra.mxu0 0.0
    %1551 = vmatprep.subr.mxu0 0.0
    %1552 = vmatpush2.msra.mxu0 0.0
    %1553 = vmatprep.subr.mxu0 0.0
    %1554 = vmatpush2.msra.mxu0 0.0
    %1555 = vmatprep.subr.mxu0 0.0
    %1556 = vmatpush2.msra.mxu0 0.0
    %1557 = vmatprep.subr.mxu0 0.0
    %1558 = vmatpush2.msra.mxu0 0.0
    %1559 = vmatprep.subr.mxu0 0.0
    %1560 = vmatpush2.msra.mxu0 0.0
    %1561 = vmatprep.subr.mxu0 0.0
    %1562 = vmatpush2.msra.mxu0 0.0
    %1563 = vmatprep.subr.mxu0 0.0
    %1564 = vmatpush2.msra.mxu0 0.0
    %1565 = vmatprep.subr.mxu0 0.0
    %1566 = vmatpush2.msra.mxu0 0.0
    %1567 = vmatprep.subr.mxu0 0.0
    %1568 = vmatpush2.msra.mxu0 0.0
    %1569 = vmatprep.subr.mxu0 0.0
    %1570 = vmatpush2.msra.mxu0 0.0
    %1571 = vmatprep.subr.mxu0 0.0
    %1572 = vmatpush2.msra.mxu0 0.0
    %1573 = vmatprep.mubr.f32.mxu0 0.0
    %1574 = vmatmul.mubr.f32.gmra.mxu0 %v1501
    %v1575 = vpop.f32.mrf.mxu0
    %v1576 = vadd.f32 0.0, %v1575
    %v1577 = vpop.f32.mrf.mxu0
    %1578 = vmatprep.mubr.f32.mxu0 0.0
    %1579 = vmatmul.mubr.f32.gmra.mxu0 %v1503
    %v1580 = vpop.f32.mrf.mxu0
    %v1581 = vadd.f32 0.0, %v1580
    %v1582 = vpop.f32.mrf.mxu0
    %1583 = vmatprep.mubr.f32.mxu0 0.0
    %1584 = vmatmul.mubr.f32.gmra.mxu0 %v1505
    %v1585 = vpop.f32.mrf.mxu0
    %v1586 = vadd.f32 0.0, %v1585
    %v1587 = vpop.f32.mrf.mxu0
    %1588 = vmatprep.mubr.f32.mxu0 0.0
    %1589 = vmatmul.mubr.f32.gmra.mxu0 %v1507
    %v1590 = vpop.f32.mrf.mxu0
    %v1591 = vadd.f32 0.0, %v1590
    %v1592 = vpop.f32.mrf.mxu0
    %1593 = vdwg.mxu0
    %v1594 = vadd.f32 %v1468, %v1576
    %v1595 = vadd.f32 %v1473, %v1581
    %v1596 = vadd.f32 %v1478, %v1586
    %v1597 = vadd.f32 %v1483, %v1591
    %v1598 = vrot.slane %v1268, 3
    %v1599 = vrot.slane %v1269, 3
    %v1600 = vsel %vm426, %v1598, %v1599
    %v1601 = vrot.slane %v1270, 3
    %v1602 = vsel %vm426, %v1599, %v1601
    %v1603 = vrot.slane %v1271, 3
    %v1604 = vrot.slane %v1272, 3
    %v1605 = vsel %vm426, %v1603, %v1604
    %v1606 = vrot.slane %v1273, 3
    %v1607 = vsel %vm426, %v1604, %v1606
    %s1608 = scalar_lea.vmem [#allocation6], 416
    %v1609 = vld [vmem:[%s1608] sm:$0xff]
    %v1610 = vld [vmem:[%s1608 + $0x8] sm:$0xff]
    %v1611 = vld [vmem:[%s1608 + $0x10] sm:$0xff]
    %v1612 = vld [vmem:[%s1608 + $0x18] sm:$0xff]
    %v1613 = vsel %vm79, %v1600, 0
    %v1615 = vsel %vm79, %v1602, 0
    %v1617 = vsel %vm79, %v1605, 0
    %v1619 = vsel %vm79, %v1607, 0
    %1621 = vmatprep.subr.mxu0 0.0
    %1622 = vmatpush1.msra.mxu0 0.0
    %1623 = vmatprep.subr.mxu0 0.0
    %1624 = vmatpush1.msra.mxu0 0.0
    %1625 = vmatprep.subr.mxu0 0.0
    %1626 = vmatpush1.msra.mxu0 0.0
    %1627 = vmatprep.subr.mxu0 0.0
    %1628 = vmatpush1.msra.mxu0 0.0
    %1629 = vmatprep.subr.mxu0 0.0
    %1630 = vmatpush1.msra.mxu0 0.0
    %1631 = vmatprep.subr.mxu0 0.0
    %1632 = vmatpush1.msra.mxu0 0.0
    %1633 = vmatprep.subr.mxu0 0.0
    %1634 = vmatpush1.msra.mxu0 0.0
    %1635 = vmatprep.subr.mxu0 0.0
    %1636 = vmatpush1.msra.mxu0 0.0
    %1637 = vmatprep.subr.mxu0 0.0
    %1638 = vmatpush1.msra.mxu0 0.0
    %1639 = vmatprep.subr.mxu0 0.0
    %1640 = vmatpush1.msra.mxu0 0.0
    %1641 = vmatprep.subr.mxu0 0.0
    %1642 = vmatpush1.msra.mxu0 0.0
    %1643 = vmatprep.subr.mxu0 0.0
    %1644 = vmatpush1.msra.mxu0 0.0
    %1645 = vmatprep.subr.mxu0 0.0
    %1646 = vmatpush1.msra.mxu0 %v1612
    %1647 = vmatprep.subr.mxu0 0.0
    %1648 = vmatpush1.msra.mxu0 %v1611
    %1649 = vmatprep.subr.mxu0 0.0
    %1650 = vmatpush1.msra.mxu0 %v1610
    %1651 = vmatprep.subr.mxu0 0.0
    %1652 = vmatpush1.msra.mxu0 %v1609
    %1653 = vmatprep.subr.mxu0 0.0
    %1654 = vmatpush2.msra.mxu0 0.0
    %1655 = vmatprep.subr.mxu0 0.0
    %1656 = vmatpush2.msra.mxu0 0.0
    %1657 = vmatprep.subr.mxu0 0.0
    %1658 = vmatpush2.msra.mxu0 0.0
    %1659 = vmatprep.subr.mxu0 0.0
    %1660 = vmatpush2.msra.mxu0 0.0
    %1661 = vmatprep.subr.mxu0 0.0
    %1662 = vmatpush2.msra.mxu0 0.0
    %1663 = vmatprep.subr.mxu0 0.0
    %1664 = vmatpush2.msra.mxu0 0.0
    %1665 = vmatprep.subr.mxu0 0.0
    %1666 = vmatpush2.msra.mxu0 0.0
    %1667 = vmatprep.subr.mxu0 0.0
    %1668 = vmatpush2.msra.mxu0 0.0
    %1669 = vmatprep.subr.mxu0 0.0
    %1670 = vmatpush2.msra.mxu0 0.0
    %1671 = vmatprep.subr.mxu0 0.0
    %1672 = vmatpush2.msra.mxu0 0.0
    %1673 = vmatprep.subr.mxu0 0.0
    %1674 = vmatpush2.msra.mxu0 0.0
    %1675 = vmatprep.subr.mxu0 0.0
    %1676 = vmatpush2.msra.mxu0 0.0
    %1677 = vmatprep.subr.mxu0 0.0
    %1678 = vmatpush2.msra.mxu0 0.0
    %1679 = vmatprep.subr.mxu0 0.0
    %1680 = vmatpush2.msra.mxu0 0.0
    %1681 = vmatprep.subr.mxu0 0.0
    %1682 = vmatpush2.msra.mxu0 0.0
    %1683 = vmatprep.subr.mxu0 0.0
    %1684 = vmatpush2.msra.mxu0 0.0
    %1685 = vmatprep.mubr.f32.mxu0 0.0
    %1686 = vmatmul.mubr.f32.gmra.mxu0 %v1613
    %v1687 = vpop.f32.mrf.mxu0
    %v1688 = vadd.f32 0.0, %v1687
    %v1689 = vpop.f32.mrf.mxu0
    %1690 = vmatprep.mubr.f32.mxu0 0.0
    %1691 = vmatmul.mubr.f32.gmra.mxu0 %v1615
    %v1692 = vpop.f32.mrf.mxu0
    %v1693 = vadd.f32 0.0, %v1692
    %v1694 = vpop.f32.mrf.mxu0
    %1695 = vmatprep.mubr.f32.mxu0 0.0
    %1696 = vmatmul.mubr.f32.gmra.mxu0 %v1617
    %v1697 = vpop.f32.mrf.mxu0
    %v1698 = vadd.f32 0.0, %v1697
    %v1699 = vpop.f32.mrf.mxu0
    %1700 = vmatprep.mubr.f32.mxu0 0.0
    %1701 = vmatmul.mubr.f32.gmra.mxu0 %v1619
    %v1702 = vpop.f32.mrf.mxu0
    %v1703 = vadd.f32 0.0, %v1702
    %v1704 = vpop.f32.mrf.mxu0
    %1705 = vdwg.mxu0
    %v1706 = vadd.f32 %v1594, %v1688
    %v1707 = vadd.f32 %v1595, %v1693
    %v1708 = vadd.f32 %v1596, %v1698
    %v1709 = vadd.f32 %v1597, %v1703
    %v1710 = vrot.slane %v1268, 4
    %v1711 = vrot.slane %v1269, 4
    %v1712 = vsel %vm539, %v1710, %v1711
    %v1713 = vrot.slane %v1270, 4
    %v1714 = vsel %vm539, %v1711, %v1713
    %v1715 = vrot.slane %v1271, 4
    %v1716 = vrot.slane %v1272, 4
    %v1717 = vsel %vm539, %v1715, %v1716
    %v1718 = vrot.slane %v1273, 4
    %v1719 = vsel %vm539, %v1716, %v1718
    %s1720 = scalar_lea.vmem [#allocation6], 448
    %v1721 = vld [vmem:[%s1720] sm:$0xff]
    %v1722 = vld [vmem:[%s1720 + $0x8] sm:$0xff]
    %v1723 = vld [vmem:[%s1720 + $0x10] sm:$0xff]
    %v1724 = vld [vmem:[%s1720 + $0x18] sm:$0xff]
    %v1725 = vsel %vm79, %v1712, 0
    %v1727 = vsel %vm79, %v1714, 0
    %v1729 = vsel %vm79, %v1717, 0
    %v1731 = vsel %vm79, %v1719, 0
    %1733 = vmatprep.subr.mxu0 0.0
    %1734 = vmatpush1.msra.mxu0 0.0
    %1735 = vmatprep.subr.mxu0 0.0
    %1736 = vmatpush1.msra.mxu0 0.0
    %1737 = vmatprep.subr.mxu0 0.0
    %1738 = vmatpush1.msra.mxu0 0.0
    %1739 = vmatprep.subr.mxu0 0.0
    %1740 = vmatpush1.msra.mxu0 0.0
    %1741 = vmatprep.subr.mxu0 0.0
    %1742 = vmatpush1.msra.mxu0 0.0
    %1743 = vmatprep.subr.mxu0 0.0
    %1744 = vmatpush1.msra.mxu0 0.0
    %1745 = vmatprep.subr.mxu0 0.0
    %1746 = vmatpush1.msra.mxu0 0.0
    %1747 = vmatprep.subr.mxu0 0.0
    %1748 = vmatpush1.msra.mxu0 0.0
    %1749 = vmatprep.subr.mxu0 0.0
    %1750 = vmatpush1.msra.mxu0 0.0
    %1751 = vmatprep.subr.mxu0 0.0
    %1752 = vmatpush1.msra.mxu0 0.0
    %1753 = vmatprep.subr.mxu0 0.0
    %1754 = vmatpush1.msra.mxu0 0.0
    %1755 = vmatprep.subr.mxu0 0.0
    %1756 = vmatpush1.msra.mxu0 0.0
    %1757 = vmatprep.subr.mxu0 0.0
    %1758 = vmatpush1.msra.mxu0 %v1724
    %1759 = vmatprep.subr.mxu0 0.0
    %1760 = vmatpush1.msra.mxu0 %v1723
    %1761 = vmatprep.subr.mxu0 0.0
    %1762 = vmatpush1.msra.mxu0 %v1722
    %1763 = vmatprep.subr.mxu0 0.0
    %1764 = vmatpush1.msra.mxu0 %v1721
    %1765 = vmatprep.subr.mxu0 0.0
    %1766 = vmatpush2.msra.mxu0 0.0
    %1767 = vmatprep.subr.mxu0 0.0
    %1768 = vmatpush2.msra.mxu0 0.0
    %1769 = vmatprep.subr.mxu0 0.0
    %1770 = vmatpush2.msra.mxu0 0.0
    %1771 = vmatprep.subr.mxu0 0.0
    %1772 = vmatpush2.msra.mxu0 0.0
    %1773 = vmatprep.subr.mxu0 0.0
    %1774 = vmatpush2.msra.mxu0 0.0
    %1775 = vmatprep.subr.mxu0 0.0
    %1776 = vmatpush2.msra.mxu0 0.0
    %1777 = vmatprep.subr.mxu0 0.0
    %1778 = vmatpush2.msra.mxu0 0.0
    %1779 = vmatprep.subr.mxu0 0.0
    %1780 = vmatpush2.msra.mxu0 0.0
    %1781 = vmatprep.subr.mxu0 0.0
    %1782 = vmatpush2.msra.mxu0 0.0
    %1783 = vmatprep.subr.mxu0 0.0
    %1784 = vmatpush2.msra.mxu0 0.0
    %1785 = vmatprep.subr.mxu0 0.0
    %1786 = vmatpush2.msra.mxu0 0.0
    %1787 = vmatprep.subr.mxu0 0.0
    %1788 = vmatpush2.msra.mxu0 0.0
    %1789 = vmatprep.subr.mxu0 0.0
    %1790 = vmatpush2.msra.mxu0 0.0
    %1791 = vmatprep.subr.mxu0 0.0
    %1792 = vmatpush2.msra.mxu0 0.0
    %1793 = vmatprep.subr.mxu0 0.0
    %1794 = vmatpush2.msra.mxu0 0.0
    %1795 = vmatprep.subr.mxu0 0.0
    %1796 = vmatpush2.msra.mxu0 0.0
    %1797 = vmatprep.mubr.f32.mxu0 0.0
    %1798 = vmatmul.mubr.f32.gmra.mxu0 %v1725
    %v1799 = vpop.f32.mrf.mxu0
    %v1800 = vadd.f32 0.0, %v1799
    %v1801 = vpop.f32.mrf.mxu0
    %1802 = vmatprep.mubr.f32.mxu0 0.0
    %1803 = vmatmul.mubr.f32.gmra.mxu0 %v1727
    %v1804 = vpop.f32.mrf.mxu0
    %v1805 = vadd.f32 0.0, %v1804
    %v1806 = vpop.f32.mrf.mxu0
    %1807 = vmatprep.mubr.f32.mxu0 0.0
    %1808 = vmatmul.mubr.f32.gmra.mxu0 %v1729
    %v1809 = vpop.f32.mrf.mxu0
    %v1810 = vadd.f32 0.0, %v1809
    %v1811 = vpop.f32.mrf.mxu0
    %1812 = vmatprep.mubr.f32.mxu0 0.0
    %1813 = vmatmul.mubr.f32.gmra.mxu0 %v1731
    %v1814 = vpop.f32.mrf.mxu0
    %v1815 = vadd.f32 0.0, %v1814
    %v1816 = vpop.f32.mrf.mxu0
    %1817 = vdwg.mxu0
    %v1818 = vadd.f32 %v1706, %v1800
    %v1819 = vadd.f32 %v1707, %v1805
    %v1820 = vadd.f32 %v1708, %v1810
    %v1821 = vadd.f32 %v1709, %v1815
    %s1822 = scalar_lea.vmem %s2, 2
    %v1823 = vld [vmem:[%s1822] sm:$0x1]
    %v1825 = vlaneseq
    %v1826 = vshrl.u32 %v1825, 7
    %v1827 = vsub.s32 0, %v1826
    %v1828 = vrot.slane %v1823, %v1827
    %v1830 = vmul.f32 %v1818, %v1828
    %v1831 = vmul.f32 %v1819, %v1828
    %v1832 = vmul.f32 %v1820, %v1828
    %v1833 = vmul.f32 %v1821, %v1828
    %s1834 = scalar_lea.vmem [#allocation8], 2
    %v1835 = vld [vmem:[%s1834] sm:$0x1]
    %v1837 = vlaneseq
    %v1838 = vshrl.u32 %v1837, 7
    %v1839 = vsub.s32 0, %v1838
    %v1840 = vrot.slane %v1835, %v1839
    %v1842 = vadd.f32 %v1830, %v1840
    %v1843 = vadd.f32 %v1831, %v1840
    %v1844 = vadd.f32 %v1832, %v1840
    %v1845 = vadd.f32 %v1833, %v1840
    %v1846 = vmax.f32 %v1842, 0.0
    %v1847 = vmax.f32 %v1843, 0.0
    %v1848 = vmax.f32 %v1844, 0.0
    %v1849 = vmax.f32 %v1845, 0.0
    %v1850 = vld [vmem:[#allocation9] sm:$0xff]
    %v1851 = vld [vmem:[#allocation9 + $0x8] sm:$0xff]
    %v1852 = vld [vmem:[#allocation9 + $0x10] sm:$0xff]
    %v1853 = vld [vmem:[#allocation9 + $0x18] sm:$0xff]
    %v1854 = vld [vmem:[%s5] sm:$0x1]
    %v1856 = vlaneseq
    %v1857 = vshrl.u32 %v1856, 7
    %v1858 = vsub.s32 0, %v1857
    %v1859 = vrot.slane %v1854, %v1858
    %v1862 = vsel %vm79, %v1846, 0
    %v1865 = vsel %vm79, %v1847, 0
    %v1868 = vsel %vm79, %v1848, 0
    %v1871 = vsel %vm79, %v1849, 0
    %1873 = vmatprep.subr.mxu0 0.0
    %1874 = vmatpush1.msra.mxu0 0.0
    %1875 = vmatprep.subr.mxu0 0.0
    %1876 = vmatpush1.msra.mxu0 0.0
    %1877 = vmatprep.subr.mxu0 0.0
    %1878 = vmatpush1.msra.mxu0 0.0
    %1879 = vmatprep.subr.mxu0 0.0
    %1880 = vmatpush1.msra.mxu0 0.0
    %1881 = vmatprep.subr.mxu0 0.0
    %1882 = vmatpush1.msra.mxu0 0.0
    %1883 = vmatprep.subr.mxu0 0.0
    %1884 = vmatpush1.msra.mxu0 0.0
    %1885 = vmatprep.subr.mxu0 0.0
    %1886 = vmatpush1.msra.mxu0 0.0
    %1887 = vmatprep.subr.mxu0 0.0
    %1888 = vmatpush1.msra.mxu0 0.0
    %1889 = vmatprep.subr.mxu0 0.0
    %1890 = vmatpush1.msra.mxu0 0.0
    %1891 = vmatprep.subr.mxu0 0.0
    %1892 = vmatpush1.msra.mxu0 0.0
    %1893 = vmatprep.subr.mxu0 0.0
    %1894 = vmatpush1.msra.mxu0 0.0
    %1895 = vmatprep.subr.mxu0 0.0
    %1896 = vmatpush1.msra.mxu0 0.0
    %1897 = vmatprep.subr.mxu0 0.0
    %1898 = vmatpush1.msra.mxu0 %v1853
    %1899 = vmatprep.subr.mxu0 0.0
    %1900 = vmatpush1.msra.mxu0 %v1852
    %1901 = vmatprep.subr.mxu0 0.0
    %1902 = vmatpush1.msra.mxu0 %v1851
    %1903 = vmatprep.subr.mxu0 0.0
    %1904 = vmatpush1.msra.mxu0 %v1850
    %1905 = vmatprep.subr.mxu0 0.0
    %1906 = vmatpush2.msra.mxu0 0.0
    %1907 = vmatprep.subr.mxu0 0.0
    %1908 = vmatpush2.msra.mxu0 0.0
    %1909 = vmatprep.subr.mxu0 0.0
    %1910 = vmatpush2.msra.mxu0 0.0
    %1911 = vmatprep.subr.mxu0 0.0
    %1912 = vmatpush2.msra.mxu0 0.0
    %1913 = vmatprep.subr.mxu0 0.0
    %1914 = vmatpush2.msra.mxu0 0.0
    %1915 = vmatprep.subr.mxu0 0.0
    %1916 = vmatpush2.msra.mxu0 0.0
    %1917 = vmatprep.subr.mxu0 0.0
    %1918 = vmatpush2.msra.mxu0 0.0
    %1919 = vmatprep.subr.mxu0 0.0
    %1920 = vmatpush2.msra.mxu0 0.0
    %1921 = vmatprep.subr.mxu0 0.0
    %1922 = vmatpush2.msra.mxu0 0.0
    %1923 = vmatprep.subr.mxu0 0.0
    %1924 = vmatpush2.msra.mxu0 0.0
    %1925 = vmatprep.subr.mxu0 0.0
    %1926 = vmatpush2.msra.mxu0 0.0
    %1927 = vmatprep.subr.mxu0 0.0
    %1928 = vmatpush2.msra.mxu0 0.0
    %1929 = vmatprep.subr.mxu0 0.0
    %1930 = vmatpush2.msra.mxu0 0.0
    %1931 = vmatprep.subr.mxu0 0.0
    %1932 = vmatpush2.msra.mxu0 0.0
    %1933 = vmatprep.subr.mxu0 0.0
    %1934 = vmatpush2.msra.mxu0 0.0
    %1935 = vmatprep.subr.mxu0 0.0
    %1936 = vmatpush2.msra.mxu0 0.0
    %1937 = vmatprep.mubr.f32.mxu0 0.0
    %1938 = vmatmul.mubr.f32.gmra.mxu0 %v1862
    %v1939 = vpop.f32.mrf.mxu0
    %v1940 = vadd.f32 %v1859, %v1939
    %v1941 = vpop.f32.mrf.mxu0
    %1942 = vmatprep.mubr.f32.mxu0 0.0
    %1943 = vmatmul.mubr.f32.gmra.mxu0 %v1865
    %v1944 = vpop.f32.mrf.mxu0
    %v1945 = vadd.f32 %v1859, %v1944
    %v1946 = vpop.f32.mrf.mxu0
    %1947 = vmatprep.mubr.f32.mxu0 0.0
    %1948 = vmatmul.mubr.f32.gmra.mxu0 %v1868
    %v1949 = vpop.f32.mrf.mxu0
    %v1950 = vadd.f32 %v1859, %v1949
    %v1951 = vpop.f32.mrf.mxu0
    %1952 = vmatprep.mubr.f32.mxu0 0.0
    %1953 = vmatmul.mubr.f32.gmra.mxu0 %v1871
    %v1954 = vpop.f32.mrf.mxu0
    %v1955 = vadd.f32 %v1859, %v1954
    %v1956 = vpop.f32.mrf.mxu0
    %1957 = vdwg.mxu0
    %1958 = vst [vmem:[#allocation11] sm:$0xff] %v1940
    %1959 = vst [vmem:[#allocation11 + $0x8] sm:$0xff] %v1945
    %1960 = vst [vmem:[#allocation11 + $0x10] sm:$0xff] %v1950
    %1961 = vst [vmem:[#allocation11 + $0x18] sm:$0xff] %v1955
    // Predicated region
    $region42: #{tpu_custom_call.1} parent=1 // pred_check
      _
    $region43: #{tpu_custom_call.1} parent=1 // pred_check_branch
      %1963 = sbr.rel (0) target = $region45
    $region44: #{tpu_custom_call.1} parent=1 // pred_region
      %s1965 = ssub.s32 512, 512
      %1966 = vsyncadd [#allocation5], %s1965
      %s1967 = sshll.u32 [#allocation11], 4
      %s1968 = int_to_ptr.vmem [resolvable:$true] %s1967
      %1973 = dma.vmem_to_hbm [thread:$0]  %s1968, 512, %s6, [#allocation5], 128, 128, 8
    $region45: #{tpu_custom_call.1} parent=1 // pred_fallthru
      _
    // Predicated region
    $region46: #{tpu_custom_call.1} parent=1 // pred_check
      _
    $region47: #{tpu_custom_call.1} parent=1 // pred_check_branch
      %1975 = sbr.rel (0) target = $region49
    $region48: #{tpu_custom_call.1} parent=1 // pred_region
      %1976 = dma.done [#allocation5], 512
    $region49: #{tpu_custom_call.1} parent=1 // pred_fallthru
      _
    %1977 = vsyncpa [#allocation4], 1
    %1978 = vsyncpa [#allocation7], 1
    %1979 = vsyncpa [#allocation10], 1
    %1980 = vsyncpa [#allocation5], 1

</llo_original>
